<compile_context>
chip_gen: v5e
topology: v5e:2x2
jax: 0.10.0
libtpu: 0.0.40
codegen_flags: <defaults>
</compile_context>

<pallas_src>
import jax
import jax.numpy as jnp
import numpy as np
from jax.experimental import pallas as pl
from jax.experimental.pallas import tpu as pltpu

HERO_COUNT = 126
HIDDEN_DIMS = [256, 128, 64]
IN_DIM = HERO_COUNT * 2  # 252
FLOPS_PER_ROW = 2 * (IN_DIM * 256 + 256 * 128 + 128 * 64 + 64 * 1)


def _round_up(n, m):
    return ((n + m - 1) // m) * m


def _num_tensorcores():
    """Best-effort count of TensorCores one kernel can shard its grid across."""
    try:
        kind = jax.devices()[0].device_kind.lower()
    except Exception:
        return 1
    if "lite" in kind or "v5e" in kind or "v6" in kind:
        return 1                      # v5e / v6e: single TensorCore per chip
    if any(t in kind for t in ("v4", "v5", "v7")):
        return 2                      # v4 / v5p / v7x megacore: 2 TCs share the grid
    return 1


def _choose_bm(B, bm, num_cores):
    """Batch tile: one big tile on single-TC chips, even split on megacore chips."""
    bm = max(8, min(bm, _round_up(B, 8)))
    if num_cores > 1 and B > 16:
        # Round the block count to a multiple of the core count so the
        # "parallel" grid splits evenly (an odd small count idles one TC).
        n_blocks = _round_up(max(pl.cdiv(B, bm), num_cores), num_cores)
        bm = max(8, min(bm, _round_up(pl.cdiv(B, n_blocks), 8)))
    return bm


def _vmem_limit_bytes(bm, x_itemsize):
    """Rough scoped-VMEM need (x double-buffer + activations) with 2x headroom."""
    per_row = (IN_DIM * (2 * x_itemsize + 2)          # x double-buffer + bf16 copy
               + (256 + 128 + 64) * (4 + 2)           # f32 + bf16 activations
               + 256)                                 # output / misc
    need = 2 * bm * per_row + (1 << 20)               # params + slack
    return int(min(48 * 2**20, max(16 * 2**20, need)))


def mlp_kernel(x_ref,
               w1_ref, b1_ref,
               w2_ref, b2_ref,
               w3_ref, b3_ref,
               wo_ref, bo_ref,
               o_ref):
    """One (bm, 252) batch tile -> one lane-dense (1, bm) output row."""
    cdt = w1_ref.dtype  # matmul-input dtype (bf16); accumulation stays f32.

    # Layer 1: Linear(252 -> 256) + ReLU.  astype is a no-op when x is already
    # streamed in the compute dtype (the bf16 fast path).
    # TODO(synk): training-mode Dropout(p=0.3) would need pltpu.prng_seed +
    #             pltpu.prng_random_bits masking; eval-mode forward is identity.
    h = jnp.dot(x_ref[...].astype(cdt), w1_ref[...],
                preferred_element_type=jnp.float32) + b1_ref[...]
    h = jnp.maximum(h, 0.0)

    # Layer 2: Linear(256 -> 128) + ReLU.
    h = jnp.dot(h.astype(cdt), w2_ref[...],
                preferred_element_type=jnp.float32) + b2_ref[...]
    h = jnp.maximum(h, 0.0)

    # Layer 3: Linear(128 -> 64) + ReLU.
    h = jnp.dot(h.astype(cdt), w3_ref[...],
                preferred_element_type=jnp.float32) + b3_ref[...]
    h = jnp.maximum(h, 0.0)

    # Output head Linear(64 -> 1), produced directly as a lane-dense row:
    #   out_row(1, bm) = wo_row(1, 64) . h(bm, 64)^T   (contract over 64 feats)
    # Full lane width => unmasked stores, dense HBM writeback; the wrapper
    # reshape back to (B, 1) is free layout plumbing.
    y = jax.lax.dot_general(wo_ref[...], h.astype(cdt),
                            (((1,), (1,)), ((), ())),
                            preferred_element_type=jnp.float32)
    o_ref[...] = y + bo_ref[...]


def prepare_params(params, compute_dtype=jnp.bfloat16):
    """One-time conversion of raw (w, b) pairs into kernel-ready layout/dtypes.

    Call ONCE outside the per-call path: weights -> bf16 MXU-input dtype,
    biases stay f32, and the 64->1 head becomes a (1, 64) row + (1, 1) bias
    for the lane-dense trans_b head contraction.
    """
    w1, b1, w2, b2, w3, b3, wo, bo = params
    return (
        w1.astype(compute_dtype), jnp.reshape(b1, (1, -1)).astype(jnp.float32),
        w2.astype(compute_dtype), jnp.reshape(b2, (1, -1)).astype(jnp.float32),
        w3.astype(compute_dtype), jnp.reshape(b3, (1, -1)).astype(jnp.float32),
        jnp.reshape(wo, (1, -1)).astype(compute_dtype),
        jnp.reshape(bo, (1, 1)).astype(jnp.float32),
    )


def _is_prepared(params, compute_dtype):
    wo = params[6]
    return params[0].dtype == compute_dtype and wo.ndim == 2 and wo.shape[0] == 1


def dota2_mlp(x, params, *, bm=2048, compute_dtype=jnp.bfloat16, num_cores=None):
    """Fused Dota2MLP forward.

    x: (B, 252) float32 or bfloat16 (bf16 halves the dominant HBM read).
    params: raw (w, b) pairs or the output of prepare_params().
    Returns (B, 1) float32.
    """
    B, D = x.shape
    assert D == IN_DIM

    if not _is_prepared(params, compute_dtype):
        # Fallback: cast per call.  Prefer calling prepare_params() once.
        params = prepare_params(params, compute_dtype)

    if num_cores is None:
        num_cores = _num_tensorcores()
    bm = _choose_bm(B, bm, num_cores)
    n_blocks = pl.cdiv(B, bm)           # ragged last block handled by Pallas
    grid = (n_blocks,)

    in_specs = [pl.BlockSpec((bm, IN_DIM), lambda i: (i, 0))]
    # Constant index_maps => Pallas keeps these tiny tensors (~0.2 MiB total)
    # VMEM-resident across grid steps; only x is actually streamed per step.
    for p in params:
        in_specs.append(pl.BlockSpec(p.shape, lambda i: (0, 0)))

    bytes_accessed = int(B * IN_DIM * x.dtype.itemsize          # streamed x
                         + B * 4                                # f32 output
                         + sum(int(p.size) * p.dtype.itemsize for p in params))
    cost = pl.CostEstimate(flops=int(B) * FLOPS_PER_ROW,
                           transcendentals=0,
                           bytes_accessed=bytes_accessed)

    out = pl.pallas_call(
        mlp_kernel,
        out_shape=jax.ShapeDtypeStruct((n_blocks, bm), jnp.float32),
        grid=grid,
        in_specs=in_specs,
        out_specs=pl.BlockSpec((1, bm), lambda i: (i, 0)),
        compiler_params=pltpu.CompilerParams(
            dimension_semantics=("parallel",),
            vmem_limit_bytes=_vmem_limit_bytes(bm, x.dtype.itemsize)),
        cost_estimate=cost,
    )(x, *params)

    # (n_blocks, bm) row-major is batch order; drop the padded tail rows.
    return out.reshape(n_blocks * bm, 1)[:B]


def dota2_mlp_ref(x, params, compute_dtype=jnp.bfloat16):
    """Pure-JAX reference emulating the kernel numerics (bf16 inputs, f32 acc)."""
    w1, b1, w2, b2, w3, b3, wo, bo = params
    c = lambda a: a.astype(compute_dtype)
    h = jnp.maximum(jnp.dot(c(x), c(w1), preferred_element_type=jnp.float32) + b1, 0.0)
    h = jnp.maximum(jnp.dot(c(h), c(w2), preferred_element_type=jnp.float32) + b2, 0.0)
    h = jnp.maximum(jnp.dot(c(h), c(w3), preferred_element_type=jnp.float32) + b3, 0.0)
    return jnp.dot(c(h), c(wo), preferred_element_type=jnp.float32) + bo


def init_params(key):
    """Deterministic synthetic params mirroring nn.Linear default init shapes."""
    dims = [IN_DIM] + HIDDEN_DIMS + [1]
    params = []
    for i in range(len(dims) - 1):
        key, kw, kb = jax.random.split(key, 3)
        bound = 1.0 / np.sqrt(dims[i])
        w = jax.random.uniform(kw, (dims[i], dims[i + 1]), jnp.float32, -bound, bound)
        b = jax.random.uniform(kb, (1, dims[i + 1]), jnp.float32, -bound, bound)
        params.extend([w, b])
    return params


if __name__ == "__main__":
    key = jax.random.PRNGKey(0)
    key, kx = jax.random.split(key)
    batch = 300  # non-multiple of 8*anything: exercises the ragged last block
    x = jax.random.normal(kx, (batch, IN_DIM), jnp.float32)
    params = init_params(key)
    ker_params = prepare_params(params)   # one-time weight cast / head re-layout

    # f32-ingest path (matches the PyTorch API dtype).
    out_f32 = jax.block_until_ready(dota2_mlp(x, ker_params))
    assert out_f32.shape == (batch, 1)

    # bf16-ingest fast path (halves the dominant HBM read of x; numerically the
    # same because the kernel casts matmul inputs to bf16 anyway).
    out_bf16 = jax.block_until_ready(dota2_mlp(x.astype(jnp.bfloat16), ker_params))

    # Tiny batch: single ragged block, lane-dense (1, 8) output tile.
    key, kx2 = jax.random.split(key)
    x_small = jax.random.normal(kx2, (5, IN_DIM), jnp.float32)
    out_small = jax.block_until_ready(dota2_mlp(x_small, ker_params))
    assert out_small.shape == (5, 1)

    ref = dota2_mlp_ref(x, params)
    ref_small = dota2_mlp_ref(x_small, params)
    # Kernel and reference both use bf16 matmul inputs with f32 accumulation;
    # residual differences are MXU summation order + bf16 rounding of the
    # intermediate activations.
    np.testing.assert_allclose(np.asarray(out_f32), np.asarray(ref), rtol=2e-3, atol=2e-3)
    np.testing.assert_allclose(np.asarray(out_bf16), np.asarray(ref), rtol=2e-3, atol=2e-3)
    np.testing.assert_allclose(np.asarray(out_small), np.asarray(ref_small), rtol=2e-3, atol=2e-3)
    print("KERNEL_OK")
</pallas_src>

<mosaic_0001>
module attributes {stable_mosaic.version = 11 : i64} {
  func.func @mlp_kernel(%arg0: i32, %arg1: memref<304x252xf32, #tpu.memory_space<vmem>>, %arg2: memref<252x256xbf16, #tpu.memory_space<vmem>>, %arg3: memref<1x256xf32, #tpu.memory_space<vmem>>, %arg4: memref<256x128xbf16, #tpu.memory_space<vmem>>, %arg5: memref<1x128xf32, #tpu.memory_space<vmem>>, %arg6: memref<128x64xbf16, #tpu.memory_space<vmem>>, %arg7: memref<1x64xf32, #tpu.memory_space<vmem>>, %arg8: memref<1x64xbf16, #tpu.memory_space<vmem>>, %arg9: memref<1x1xf32, #tpu.memory_space<vmem>>, %arg10: memref<1x304xf32, #tpu.memory_space<vmem>>) attributes {dimension_semantics = [#tpu.dimension_semantics<parallel>], iteration_bounds = array<i64: 1>, scalar_prefetch = 0 : i64, scratch_operands = 0 : i64, tpu.core_type = #tpu.core_type<tc>, window_params = [{transform_indices = @transform_0, window_bounds = array<i64: 304, 252>}, {pipeline_mode = #tpu.pipeline_mode<synchronous>, transform_indices = @transform_1, window_bounds = array<i64: 252, 256>}, {pipeline_mode = #tpu.pipeline_mode<synchronous>, transform_indices = @transform_2, window_bounds = array<i64: 1, 256>}, {pipeline_mode = #tpu.pipeline_mode<synchronous>, transform_indices = @transform_3, window_bounds = array<i64: 256, 128>}, {pipeline_mode = #tpu.pipeline_mode<synchronous>, transform_indices = @transform_4, window_bounds = array<i64: 1, 128>}, {pipeline_mode = #tpu.pipeline_mode<synchronous>, transform_indices = @transform_5, window_bounds = array<i64: 128, 64>}, {pipeline_mode = #tpu.pipeline_mode<synchronous>, transform_indices = @transform_6, window_bounds = array<i64: 1, 64>}, {pipeline_mode = #tpu.pipeline_mode<synchronous>, transform_indices = @transform_7, window_bounds = array<i64: 1, 64>}, {pipeline_mode = #tpu.pipeline_mode<synchronous>, transform_indices = @transform_8, window_bounds = array<i64: 1, 1>}, {transform_indices = @transform_9, window_bounds = array<i64: 1, 304>}]} {
    %c0 = arith.constant 0 : index
    %c0_0 = arith.constant 0 : index
    %0 = vector.load %arg1[%c0, %c0_0] : memref<304x252xf32, #tpu.memory_space<vmem>>, vector<304x252xf32>
    %1 = arith.truncf %0 : vector<304x252xf32> to vector<304x252xbf16>
    %c0_1 = arith.constant 0 : index
    %c0_2 = arith.constant 0 : index
    %2 = vector.load %arg2[%c0_1, %c0_2] : memref<252x256xbf16, #tpu.memory_space<vmem>>, vector<252x256xbf16>
    %cst = arith.constant dense<0.000000e+00> : vector<304x256xf32>
    %3 = tpu.matmul %1, %2, %cst {dimension_numbers = #tpu.dot_dimension_numbers<[1], [0], [0], [1], [0, 0, 1, 1], [], []>} : vector<304x252xbf16>, vector<252x256xbf16>, vector<304x256xf32> -> vector<304x256xf32>
    %c0_3 = arith.constant 0 : index
    %c0_4 = arith.constant 0 : index
    %4 = vector.load %arg3[%c0_3, %c0_4] : memref<1x256xf32, #tpu.memory_space<vmem>>, vector<1x256xf32>
    %5 = vector.broadcast %4 : vector<1x256xf32> to vector<304x256xf32>
    %6 = arith.addf %3, %5 : vector<304x256xf32>
    %cst_5 = arith.constant 0.000000e+00 : f32
    %7 = vector.broadcast %cst_5 : f32 to vector<304x256xf32>
    %8 = arith.maximumf %6, %7 : vector<304x256xf32>
    %9 = arith.truncf %8 : vector<304x256xf32> to vector<304x256xbf16>
    %c0_6 = arith.constant 0 : index
    %c0_7 = arith.constant 0 : index
    %10 = vector.load %arg4[%c0_6, %c0_7] : memref<256x128xbf16, #tpu.memory_space<vmem>>, vector<256x128xbf16>
    %cst_8 = arith.constant dense<0.000000e+00> : vector<304x128xf32>
    %11 = tpu.matmul %9, %10, %cst_8 {dimension_numbers = #tpu.dot_dimension_numbers<[1], [0], [0], [1], [0, 0, 1, 1], [], []>} : vector<304x256xbf16>, vector<256x128xbf16>, vector<304x128xf32> -> vector<304x128xf32>
    %c0_9 = arith.constant 0 : index
    %c0_10 = arith.constant 0 : index
    %12 = vector.load %arg5[%c0_9, %c0_10] : memref<1x128xf32, #tpu.memory_space<vmem>>, vector<1x128xf32>
    %13 = vector.broadcast %12 : vector<1x128xf32> to vector<304x128xf32>
    %14 = arith.addf %11, %13 : vector<304x128xf32>
    %cst_11 = arith.constant 0.000000e+00 : f32
    %15 = vector.broadcast %cst_11 : f32 to vector<304x128xf32>
    %16 = arith.maximumf %14, %15 : vector<304x128xf32>
    %17 = arith.truncf %16 : vector<304x128xf32> to vector<304x128xbf16>
    %c0_12 = arith.constant 0 : index
    %c0_13 = arith.constant 0 : index
    %18 = vector.load %arg6[%c0_12, %c0_13] : memref<128x64xbf16, #tpu.memory_space<vmem>>, vector<128x64xbf16>
    %cst_14 = arith.constant dense<0.000000e+00> : vector<304x64xf32>
    %19 = tpu.matmul %17, %18, %cst_14 {dimension_numbers = #tpu.dot_dimension_numbers<[1], [0], [0], [1], [0, 0, 1, 1], [], []>} : vector<304x128xbf16>, vector<128x64xbf16>, vector<304x64xf32> -> vector<304x64xf32>
    %c0_15 = arith.constant 0 : index
    %c0_16 = arith.constant 0 : index
    %20 = vector.load %arg7[%c0_15, %c0_16] : memref<1x64xf32, #tpu.memory_space<vmem>>, vector<1x64xf32>
    %21 = vector.broadcast %20 : vector<1x64xf32> to vector<304x64xf32>
    %22 = arith.addf %19, %21 : vector<304x64xf32>
    %cst_17 = arith.constant 0.000000e+00 : f32
    %23 = vector.broadcast %cst_17 : f32 to vector<304x64xf32>
    %24 = arith.maximumf %22, %23 : vector<304x64xf32>
    %c0_18 = arith.constant 0 : index
    %c0_19 = arith.constant 0 : index
    %25 = vector.load %arg8[%c0_18, %c0_19] : memref<1x64xbf16, #tpu.memory_space<vmem>>, vector<1x64xbf16>
    %26 = arith.truncf %24 : vector<304x64xf32> to vector<304x64xbf16>
    %cst_20 = arith.constant dense<0.000000e+00> : vector<1x304xf32>
    %27 = tpu.matmul %25, %26, %cst_20 {dimension_numbers = #tpu.dot_dimension_numbers<[1], [1], [0], [0], [0, 0, 1, 0], [], []>} : vector<1x64xbf16>, vector<304x64xbf16>, vector<1x304xf32> -> vector<1x304xf32>
    %c0_21 = arith.constant 0 : index
    %c0_22 = arith.constant 0 : index
    %28 = vector.load %arg9[%c0_21, %c0_22] : memref<1x1xf32, #tpu.memory_space<vmem>>, vector<1x1xf32>
    %29 = vector.broadcast %28 : vector<1x1xf32> to vector<1x304xf32>
    %30 = arith.addf %27, %29 : vector<1x304xf32>
    %c0_23 = arith.constant 0 : index
    %c0_24 = arith.constant 0 : index
    %31 = vector.load %arg10[%c0_23, %c0_24] : memref<1x304xf32, #tpu.memory_space<vmem>>, vector<1x304xf32>
    tpu.vector_store %arg10[%c0_23, %c0_24], %30 {strides = array<i32>} : memref<1x304xf32, #tpu.memory_space<vmem>>, vector<1x304xf32>,
    return
  }
  func.func @transform_0(%arg0: i32) -> (i32, i32) {
    %c0_i32 = arith.constant 0 : i32
    %c0_i32_0 = arith.constant 0 : i32
    return %arg0, %c0_i32 : i32, i32
  }
  func.func @transform_1(%arg0: i32) -> (i32, i32) {
    %c0_i32 = arith.constant 0 : i32
    %c0_i32_0 = arith.constant 0 : i32
    %c0_i32_1 = arith.constant 0 : i32
    return %c0_i32, %c0_i32_0 : i32, i32
  }
  func.func @transform_2(%arg0: i32) -> (i32, i32) {
    %c0_i32 = arith.constant 0 : i32
    %c0_i32_0 = arith.constant 0 : i32
    %c0_i32_1 = arith.constant 0 : i32
    return %c0_i32, %c0_i32_0 : i32, i32
  }
  func.func @transform_3(%arg0: i32) -> (i32, i32) {
    %c0_i32 = arith.constant 0 : i32
    %c0_i32_0 = arith.constant 0 : i32
    %c0_i32_1 = arith.constant 0 : i32
    return %c0_i32, %c0_i32_0 : i32, i32
  }
  func.func @transform_4(%arg0: i32) -> (i32, i32) {
    %c0_i32 = arith.constant 0 : i32
    %c0_i32_0 = arith.constant 0 : i32
    %c0_i32_1 = arith.constant 0 : i32
    return %c0_i32, %c0_i32_0 : i32, i32
  }
  func.func @transform_5(%arg0: i32) -> (i32, i32) {
    %c0_i32 = arith.constant 0 : i32
    %c0_i32_0 = arith.constant 0 : i32
    %c0_i32_1 = arith.constant 0 : i32
    return %c0_i32, %c0_i32_0 : i32, i32
  }
  func.func @transform_6(%arg0: i32) -> (i32, i32) {
    %c0_i32 = arith.constant 0 : i32
    %c0_i32_0 = arith.constant 0 : i32
    %c0_i32_1 = arith.constant 0 : i32
    return %c0_i32, %c0_i32_0 : i32, i32
  }
  func.func @transform_7(%arg0: i32) -> (i32, i32) {
    %c0_i32 = arith.constant 0 : i32
    %c0_i32_0 = arith.constant 0 : i32
    %c0_i32_1 = arith.constant 0 : i32
    return %c0_i32, %c0_i32_0 : i32, i32
  }
  func.func @transform_8(%arg0: i32) -> (i32, i32) {
    %c0_i32 = arith.constant 0 : i32
    %c0_i32_0 = arith.constant 0 : i32
    %c0_i32_1 = arith.constant 0 : i32
    return %c0_i32, %c0_i32_0 : i32, i32
  }
  func.func @transform_9(%arg0: i32) -> (i32, i32) {
    %c0_i32 = arith.constant 0 : i32
    %c0_i32_0 = arith.constant 0 : i32
    return %arg0, %c0_i32 : i32, i32
  }
}

</mosaic_0001>

<llo_original>
// kernel: tpu_custom_call.1
$region0: #{tpu_custom_call.1}
  #allocation0 [shape = 'u32[]', space=smem, size = 0x4, offset = 0x4, fixed_abs, tag = 'smem constant byte address 0x4 - core index']
  #allocation1 [shape = 'u32[72,128]{1,0:T(1,128)}', space=vmem, size = 0x9000, scoped, tag = 'internal scratch']
  #allocation2 [shape = 'f32[1,1]{1,0:T(1,128)S(1)}', space=vmem, size = 0x200, scoped, tag = 'scoped memory for tpu_custom_call.1']
  %s0 = inlined_call_operand.hbm [shape: f32[300,252], index: 0, kind: input, shape index: {}]
  %s1 = inlined_call_operand.hbm [shape: bf16[252,256], index: 1, kind: input, shape index: {}]
  %s2 = inlined_call_operand.vmem [shape: f32[1,256], index: 2, kind: input, shape index: {}]
  %s3 = inlined_call_operand.hbm [shape: bf16[256,128], index: 3, kind: input, shape index: {}]
  %s4 = inlined_call_operand.vmem [shape: f32[1,128], index: 4, kind: input, shape index: {}]
  %s5 = inlined_call_operand.vmem [shape: bf16[128,64], index: 5, kind: input, shape index: {}]
  %s6 = inlined_call_operand.vmem [shape: f32[1,64], index: 6, kind: input, shape index: {}]
  %s7 = inlined_call_operand.vmem [shape: bf16[1,64], index: 7, kind: input, shape index: {}]
  %s8 = inlined_call_operand.<no memory space> [shape: f32[1,1], index: 8, kind: input, shape index: {}]
  %s9 = inlined_call_operand.hbm [shape: f32[1,304], index: 9, kind: output, shape index: {}]
  %s10 = sld [smem:[#allocation0]]
  $region58: #{tpu_custom_call.1} parent=0
    _
  %s12 = ssub.s32 1, %s10
  %s13 = scalar_select 0, %s12, %s10
  %v14 = vstv %s8
  %15 = vst [vmem:[#allocation2] sm:$0x1] %v14
  $region1: #{tpu_custom_call.1} parent=0
    #allocation3 [shape = 'u8[311296]{0}', space=vmem, size = 0x4c000, scoped, tag = 'input window, operand 0, single buffered']
    #allocation4 [shape = 's32[1]{0}', space=sflag, size = 0x4, scoped, tag = 'scoped memory for tpu_custom_call.1']
    #allocation5 [shape = 's32[1]{0}', space=sflag, size = 0x4, scoped, tag = 'scoped memory for tpu_custom_call.1']
    #allocation6 [shape = 'u8[131072]{0}', space=vmem, size = 0x20000, scoped, tag = 'input window, operand 1, single buffered']
    #allocation7 [shape = 's32[1]{0}', space=sflag, size = 0x4, scoped, tag = 'scoped memory for tpu_custom_call.1']
    #allocation8 [shape = 'u8[65536]{0}', space=vmem, size = 0x10000, scoped, tag = 'input window, operand 3, single buffered']
    #allocation9 [shape = 'u8[1536]{0}', space=vmem, size = 0x800, scoped, tag = 'output window, operand 0, single buffered']
    %16 = vsyncpa [#allocation4], 0
    %17 = vsyncpa [#allocation7], 0
    %18 = vsyncpa [#allocation5], 0
    // Predicated region
    $region2: #{tpu_custom_call.1} parent=1 // pred_check
      _
    $region3: #{tpu_custom_call.1} parent=1 // pred_check_branch
      %20 = sbr.rel (0) target = $region5
    $region4: #{tpu_custom_call.1} parent=1 // pred_region
      %22 = vsyncadd [#allocation4], 0
      %s23 = sshll.u32 %s0, 4
      %s24 = int_to_ptr.hbm [resolvable:$true] %s23
      %s25 = sshll.u32 [#allocation3], 4
      %s26 = int_to_ptr.vmem [resolvable:$true] %s25
      %31 = dma.hbm_to_vmem [thread:$0]  %s24, 9728, %s26, [#allocation4], 256, 256, 16
    $region5: #{tpu_custom_call.1} parent=1 // pred_fallthru
      _
    // Predicated region
    $region6: #{tpu_custom_call.1} parent=1 // pred_check
      _
    $region7: #{tpu_custom_call.1} parent=1 // pred_check_branch
      %33 = sbr.rel (0) target = $region9
    $region8: #{tpu_custom_call.1} parent=1 // pred_region
      %35 = vsyncadd [#allocation7], 0
      %s36 = sshll.u32 %s1, 4
      %s37 = int_to_ptr.hbm [resolvable:$true] %s36
      %s38 = sshll.u32 [#allocation6], 4
      %s39 = int_to_ptr.vmem [resolvable:$true] %s38
      %44 = dma.hbm_to_vmem [thread:$0]  %s37, 4096, %s39, [#allocation7], 128, 128, 8
    $region9: #{tpu_custom_call.1} parent=1 // pred_fallthru
      _
    // Predicated region
    $region10: #{tpu_custom_call.1} parent=1 // pred_check
      _
    $region11: #{tpu_custom_call.1} parent=1 // pred_check_branch
      %46 = sbr.rel (0) target = $region13
    $region12: #{tpu_custom_call.1} parent=1 // pred_region
      _
    $region13: #{tpu_custom_call.1} parent=1 // pred_fallthru
      _
    // Predicated region
    $region14: #{tpu_custom_call.1} parent=1 // pred_check
      _
    $region15: #{tpu_custom_call.1} parent=1 // pred_check_branch
      %48 = sbr.rel (0) target = $region17
    $region16: #{tpu_custom_call.1} parent=1 // pred_region
      %50 = vsyncadd [#allocation7], 0
      %s51 = sshll.u32 %s3, 4
      %s52 = int_to_ptr.hbm [resolvable:$true] %s51
      %s53 = sshll.u32 [#allocation8], 4
      %s54 = int_to_ptr.vmem [resolvable:$true] %s53
      %59 = dma.hbm_to_vmem [thread:$0]  %s52, 2048, %s54, [#allocation7], 64, 64, 4
    $region17: #{tpu_custom_call.1} parent=1 // pred_fallthru
      _
    // Predicated region
    $region18: #{tpu_custom_call.1} parent=1 // pred_check
      _
    $region19: #{tpu_custom_call.1} parent=1 // pred_check_branch
      %61 = sbr.rel (0) target = $region21
    $region20: #{tpu_custom_call.1} parent=1 // pred_region
      _
    $region21: #{tpu_custom_call.1} parent=1 // pred_fallthru
      _
    // Predicated region
    $region22: #{tpu_custom_call.1} parent=1 // pred_check
      _
    $region23: #{tpu_custom_call.1} parent=1 // pred_check_branch
      %63 = sbr.rel (0) target = $region25
    $region24: #{tpu_custom_call.1} parent=1 // pred_region
      _
    $region25: #{tpu_custom_call.1} parent=1 // pred_fallthru
      _
    // Predicated region
    $region26: #{tpu_custom_call.1} parent=1 // pred_check
      _
    $region27: #{tpu_custom_call.1} parent=1 // pred_check_branch
      %65 = sbr.rel (0) target = $region29
    $region28: #{tpu_custom_call.1} parent=1 // pred_region
      _
    $region29: #{tpu_custom_call.1} parent=1 // pred_fallthru
      _
    // Predicated region
    $region30: #{tpu_custom_call.1} parent=1 // pred_check
      _
    $region31: #{tpu_custom_call.1} parent=1 // pred_check_branch
      %67 = sbr.rel (0) target = $region33
    $region32: #{tpu_custom_call.1} parent=1 // pred_region
      _
    $region33: #{tpu_custom_call.1} parent=1 // pred_fallthru
      _
    // Predicated region
    $region34: #{tpu_custom_call.1} parent=1 // pred_check
      _
    $region35: #{tpu_custom_call.1} parent=1 // pred_check_branch
      %69 = sbr.rel (0) target = $region37
    $region36: #{tpu_custom_call.1} parent=1 // pred_region
      _
    $region37: #{tpu_custom_call.1} parent=1 // pred_fallthru
      _
    // Predicated region
    $region38: #{tpu_custom_call.1} parent=1 // pred_check
      _
    $region39: #{tpu_custom_call.1} parent=1 // pred_check_branch
      %71 = sbr.rel (0) target = $region41
    $region40: #{tpu_custom_call.1} parent=1 // pred_region
      %73 = dma.done [#allocation4], 9728
    $region41: #{tpu_custom_call.1} parent=1 // pred_fallthru
      _
    // Predicated region
    $region42: #{tpu_custom_call.1} parent=1 // pred_check
      _
    $region43: #{tpu_custom_call.1} parent=1 // pred_check_branch
      %75 = sbr.rel (0) target = $region45
    $region44: #{tpu_custom_call.1} parent=1 // pred_region
      %77 = dma.done [#allocation7], 4096
    $region45: #{tpu_custom_call.1} parent=1 // pred_fallthru
      _
    // Predicated region
    $region46: #{tpu_custom_call.1} parent=1 // pred_check
      _
    $region47: #{tpu_custom_call.1} parent=1 // pred_check_branch
      %79 = sbr.rel (0) target = $region49
    $region48: #{tpu_custom_call.1} parent=1 // pred_region
      %81 = dma.done [#allocation7], 2048
    $region49: #{tpu_custom_call.1} parent=1 // pred_fallthru
      _
    %v83 = vld [vmem:[#allocation3] sm:$0xff]
    %v84 = vld [vmem:[#allocation3 + $0x8] sm:$0xff]
    %v85 = vld [vmem:[#allocation3 + $0x10] sm:$0xff]
    %v86 = vld [vmem:[#allocation3 + $0x18] sm:$0xff]
    %v87 = vld [vmem:[#allocation3 + $0x20] sm:$0xff]
    %v88 = vld [vmem:[#allocation3 + $0x28] sm:$0xff]
    %v89 = vld [vmem:[#allocation3 + $0x30] sm:$0xff]
    %v90 = vld [vmem:[#allocation3 + $0x38] sm:$0xff]
    %v91 = vld [vmem:[#allocation3 + $0x40] sm:$0xff]
    %v92 = vld [vmem:[#allocation3 + $0x48] sm:$0xff]
    %v93 = vld [vmem:[#allocation3 + $0x50] sm:$0xff]
    %v94 = vld [vmem:[#allocation3 + $0x58] sm:$0xff]
    %v95 = vld [vmem:[#allocation3 + $0x60] sm:$0xff]
    %v96 = vld [vmem:[#allocation3 + $0x68] sm:$0xff]
    %v97 = vld [vmem:[#allocation3 + $0x70] sm:$0xff]
    %v98 = vld [vmem:[#allocation3 + $0x78] sm:$0xff]
    %v99 = vld [vmem:[#allocation3 + $0x80] sm:$0xff]
    %v100 = vld [vmem:[#allocation3 + $0x88] sm:$0xff]
    %v101 = vld [vmem:[#allocation3 + $0x90] sm:$0xff]
    %v102 = vld [vmem:[#allocation3 + $0x98] sm:$0xff]
    %v103 = vld [vmem:[#allocation3 + $0xa0] sm:$0xff]
    %v104 = vld [vmem:[#allocation3 + $0xa8] sm:$0xff]
    %v105 = vld [vmem:[#allocation3 + $0xb0] sm:$0xff]
    %v106 = vld [vmem:[#allocation3 + $0xb8] sm:$0xff]
    %v107 = vld [vmem:[#allocation3 + $0xc0] sm:$0xff]
    %v108 = vld [vmem:[#allocation3 + $0xc8] sm:$0xff]
    %v109 = vld [vmem:[#allocation3 + $0xd0] sm:$0xff]
    %v110 = vld [vmem:[#allocation3 + $0xd8] sm:$0xff]
    %v111 = vld [vmem:[#allocation3 + $0xe0] sm:$0xff]
    %v112 = vld [vmem:[#allocation3 + $0xe8] sm:$0xff]
    %v113 = vld [vmem:[#allocation3 + $0xf0] sm:$0xff]
    %v114 = vld [vmem:[#allocation3 + $0xf8] sm:$0xff]
    %v115 = vld [vmem:[#allocation3 + $0x100] sm:$0xff]
    %v116 = vld [vmem:[#allocation3 + $0x108] sm:$0xff]
    %v117 = vld [vmem:[#allocation3 + $0x110] sm:$0xff]
    %v118 = vld [vmem:[#allocation3 + $0x118] sm:$0xff]
    %v119 = vld [vmem:[#allocation3 + $0x120] sm:$0xff]
    %v120 = vld [vmem:[#allocation3 + $0x128] sm:$0xff]
    %v121 = vld [vmem:[#allocation3 + $0x130] sm:$0xff]
    %v122 = vld [vmem:[#allocation3 + $0x138] sm:$0xff]
    %v123 = vld [vmem:[#allocation3 + $0x140] sm:$0xff]
    %v124 = vld [vmem:[#allocation3 + $0x148] sm:$0xff]
    %v125 = vld [vmem:[#allocation3 + $0x150] sm:$0xff]
    %v126 = vld [vmem:[#allocation3 + $0x158] sm:$0xff]
    %v127 = vld [vmem:[#allocation3 + $0x160] sm:$0xff]
    %v128 = vld [vmem:[#allocation3 + $0x168] sm:$0xff]
    %v129 = vld [vmem:[#allocation3 + $0x170] sm:$0xff]
    %v130 = vld [vmem:[#allocation3 + $0x178] sm:$0xff]
    %v131 = vld [vmem:[#allocation3 + $0x180] sm:$0xff]
    %v132 = vld [vmem:[#allocation3 + $0x188] sm:$0xff]
    %v133 = vld [vmem:[#allocation3 + $0x190] sm:$0xff]
    %v134 = vld [vmem:[#allocation3 + $0x198] sm:$0xff]
    %v135 = vld [vmem:[#allocation3 + $0x1a0] sm:$0xff]
    %v136 = vld [vmem:[#allocation3 + $0x1a8] sm:$0xff]
    %v137 = vld [vmem:[#allocation3 + $0x1b0] sm:$0xff]
    %v138 = vld [vmem:[#allocation3 + $0x1b8] sm:$0xff]
    %v139 = vld [vmem:[#allocation3 + $0x1c0] sm:$0xff]
    %v140 = vld [vmem:[#allocation3 + $0x1c8] sm:$0xff]
    %v141 = vld [vmem:[#allocation3 + $0x1d0] sm:$0xff]
    %v142 = vld [vmem:[#allocation3 + $0x1d8] sm:$0xff]
    %v143 = vld [vmem:[#allocation3 + $0x1e0] sm:$0xff]
    %v144 = vld [vmem:[#allocation3 + $0x1e8] sm:$0xff]
    %v145 = vld [vmem:[#allocation3 + $0x1f0] sm:$0xff]
    %v146 = vld [vmem:[#allocation3 + $0x1f8] sm:$0xff]
    %v147 = vld [vmem:[#allocation3 + $0x200] sm:$0xff]
    %v148 = vld [vmem:[#allocation3 + $0x208] sm:$0xff]
    %v149 = vld [vmem:[#allocation3 + $0x210] sm:$0xff]
    %v150 = vld [vmem:[#allocation3 + $0x218] sm:$0xff]
    %v151 = vld [vmem:[#allocation3 + $0x220] sm:$0xff]
    %v152 = vld [vmem:[#allocation3 + $0x228] sm:$0xff]
    %v153 = vld [vmem:[#allocation3 + $0x230] sm:$0xff]
    %v154 = vld [vmem:[#allocation3 + $0x238] sm:$0xff]
    %v155 = vld [vmem:[#allocation3 + $0x240] sm:$0xff]
    %v156 = vld [vmem:[#allocation3 + $0x248] sm:$0xff]
    %v157 = vld [vmem:[#allocation3 + $0x250] sm:$0xff]
    %v158 = vld [vmem:[#allocation3 + $0x258] sm:$0xff]
    %v159 = vpack.c.bf16 %v85, %v83
    %v160 = vpack.c.bf16 %v86, %v84
    %v161 = vpack.c.bf16 %v89, %v87
    %v162 = vpack.c.bf16 %v90, %v88
    %v163 = vpack.c.bf16 %v93, %v91
    %v164 = vpack.c.bf16 %v94, %v92
    %v165 = vpack.c.bf16 %v97, %v95
    %v166 = vpack.c.bf16 %v98, %v96
    %v167 = vpack.c.bf16 %v101, %v99
    %v168 = vpack.c.bf16 %v102, %v100
    %v169 = vpack.c.bf16 %v105, %v103
    %v170 = vpack.c.bf16 %v106, %v104
    %v171 = vpack.c.bf16 %v109, %v107
    %v172 = vpack.c.bf16 %v110, %v108
    %v173 = vpack.c.bf16 %v113, %v111
    %v174 = vpack.c.bf16 %v114, %v112
    %v175 = vpack.c.bf16 %v117, %v115
    %v176 = vpack.c.bf16 %v118, %v116
    %v177 = vpack.c.bf16 %v121, %v119
    %v178 = vpack.c.bf16 %v122, %v120
    %v179 = vpack.c.bf16 %v125, %v123
    %v180 = vpack.c.bf16 %v126, %v124
    %v181 = vpack.c.bf16 %v129, %v127
    %v182 = vpack.c.bf16 %v130, %v128
    %v183 = vpack.c.bf16 %v133, %v131
    %v184 = vpack.c.bf16 %v134, %v132
    %v185 = vpack.c.bf16 %v137, %v135
    %v186 = vpack.c.bf16 %v138, %v136
    %v187 = vpack.c.bf16 %v141, %v139
    %v188 = vpack.c.bf16 %v142, %v140
    %v189 = vpack.c.bf16 %v145, %v143
    %v190 = vpack.c.bf16 %v146, %v144
    %v191 = vpack.c.bf16 %v149, %v147
    %v192 = vpack.c.bf16 %v150, %v148
    %v193 = vpack.c.bf16 %v153, %v151
    %v194 = vpack.c.bf16 %v154, %v152
    %v195 = vpack.c.bf16 %v157, %v155
    %v196 = vpack.c.bf16 %v158, %v156
    %v197 = vld [vmem:[#allocation6] sm:$0xff]
    %v198 = vld [vmem:[#allocation6 + $0x8] sm:$0xff]
    %v199 = vld [vmem:[#allocation6 + $0x10] sm:$0xff]
    %v200 = vld [vmem:[#allocation6 + $0x18] sm:$0xff]
    %v201 = vld [vmem:[#allocation6 + $0x20] sm:$0xff]
    %v202 = vld [vmem:[#allocation6 + $0x28] sm:$0xff]
    %v203 = vld [vmem:[#allocation6 + $0x30] sm:$0xff]
    %v204 = vld [vmem:[#allocation6 + $0x38] sm:$0xff]
    %v205 = vld [vmem:[#allocation6 + $0x40] sm:$0xff]
    %v206 = vld [vmem:[#allocation6 + $0x48] sm:$0xff]
    %v207 = vld [vmem:[#allocation6 + $0x50] sm:$0xff]
    %v208 = vld [vmem:[#allocation6 + $0x58] sm:$0xff]
    %v209 = vld [vmem:[#allocation6 + $0x60] sm:$0xff]
    %v210 = vld [vmem:[#allocation6 + $0x68] sm:$0xff]
    %v211 = vld [vmem:[#allocation6 + $0x70] sm:$0xff]
    %v212 = vld [vmem:[#allocation6 + $0x78] sm:$0xff]
    %v213 = vld [vmem:[#allocation6 + $0x80] sm:$0xff]
    %v214 = vld [vmem:[#allocation6 + $0x88] sm:$0xff]
    %v215 = vld [vmem:[#allocation6 + $0x90] sm:$0xff]
    %v216 = vld [vmem:[#allocation6 + $0x98] sm:$0xff]
    %v217 = vld [vmem:[#allocation6 + $0xa0] sm:$0xff]
    %v218 = vld [vmem:[#allocation6 + $0xa8] sm:$0xff]
    %v219 = vld [vmem:[#allocation6 + $0xb0] sm:$0xff]
    %v220 = vld [vmem:[#allocation6 + $0xb8] sm:$0xff]
    %v221 = vld [vmem:[#allocation6 + $0xc0] sm:$0xff]
    %v222 = vld [vmem:[#allocation6 + $0xc8] sm:$0xff]
    %v223 = vld [vmem:[#allocation6 + $0xd0] sm:$0xff]
    %v224 = vld [vmem:[#allocation6 + $0xd8] sm:$0xff]
    %v225 = vld [vmem:[#allocation6 + $0xe0] sm:$0xff]
    %v226 = vld [vmem:[#allocation6 + $0xe8] sm:$0xff]
    %v227 = vld [vmem:[#allocation6 + $0xf0] sm:$0xff]
    %v228 = vld [vmem:[#allocation6 + $0xf8] sm:$0x33]
    %v229 = vld [vmem:[%s2] sm:$0x3]
    %v231 = vperm.slane %v229, 0
    %v232 = vperm.slane %v229, 1
    %v267 = vunpack.c.l.b16 %v197
    %v268 = vunpack.c.h.b16 %v197
    %v269 = vunpack.c.l.b16 %v198
    %v270 = vunpack.c.h.b16 %v198
    %v271 = vunpack.c.l.b16 %v199
    %v272 = vunpack.c.h.b16 %v199
    %v273 = vunpack.c.l.b16 %v200
    %v274 = vunpack.c.h.b16 %v200
    %v275 = vunpack.c.l.b16 %v201
    %v276 = vunpack.c.h.b16 %v201
    %v277 = vunpack.c.l.b16 %v202
    %v278 = vunpack.c.h.b16 %v202
    %v279 = vunpack.c.l.b16 %v203
    %v280 = vunpack.c.h.b16 %v203
    %v281 = vunpack.c.l.b16 %v204
    %v282 = vunpack.c.h.b16 %v204
    %v283 = vunpack.c.l.b16 %v205
    %v284 = vunpack.c.h.b16 %v205
    %v285 = vunpack.c.l.b16 %v206
    %v286 = vunpack.c.h.b16 %v206
    %v287 = vunpack.c.l.b16 %v207
    %v288 = vunpack.c.h.b16 %v207
    %v289 = vunpack.c.l.b16 %v208
    %v290 = vunpack.c.h.b16 %v208
    %v291 = vunpack.c.l.b16 %v209
    %v292 = vunpack.c.h.b16 %v209
    %v293 = vunpack.c.l.b16 %v210
    %v294 = vunpack.c.h.b16 %v210
    %v295 = vunpack.c.l.b16 %v211
    %v296 = vunpack.c.h.b16 %v211
    %v297 = vunpack.c.l.b16 %v212
    %v298 = vunpack.c.h.b16 %v212
    %v299 = vunpack.c.l.b16 %v213
    %v300 = vunpack.c.h.b16 %v213
    %v301 = vunpack.c.l.b16 %v214
    %v302 = vunpack.c.h.b16 %v214
    %v303 = vunpack.c.l.b16 %v215
    %v304 = vunpack.c.h.b16 %v215
    %v305 = vunpack.c.l.b16 %v216
    %v306 = vunpack.c.h.b16 %v216
    %v307 = vunpack.c.l.b16 %v217
    %v308 = vunpack.c.h.b16 %v217
    %v309 = vunpack.c.l.b16 %v218
    %v310 = vunpack.c.h.b16 %v218
    %v311 = vunpack.c.l.b16 %v219
    %v312 = vunpack.c.h.b16 %v219
    %v313 = vunpack.c.l.b16 %v220
    %v314 = vunpack.c.h.b16 %v220
    %v315 = vunpack.c.l.b16 %v221
    %v316 = vunpack.c.h.b16 %v221
    %v317 = vunpack.c.l.b16 %v222
    %v318 = vunpack.c.h.b16 %v222
    %v319 = vunpack.c.l.b16 %v223
    %v320 = vunpack.c.h.b16 %v223
    %v321 = vunpack.c.l.b16 %v224
    %v322 = vunpack.c.h.b16 %v224
    %v323 = vunpack.c.l.b16 %v225
    %v324 = vunpack.c.h.b16 %v225
    %v325 = vunpack.c.l.b16 %v226
    %v326 = vunpack.c.h.b16 %v226
    %v327 = vunpack.c.l.b16 %v227
    %v328 = vunpack.c.h.b16 %v227
    %v329 = vunpack.c.l.b16 %v228
    %v330 = vunpack.c.h.b16 %v228
    %v331 = vpack.c.b16 %v269, %v267
    %v332 = vpack.c.b16 %v270, %v268
    %v333 = vpack.c.b16 %v273, %v271
    %v334 = vpack.c.b16 %v274, %v272
    %v335 = vpack.c.b16 %v277, %v275
    %v336 = vpack.c.b16 %v278, %v276
    %v337 = vpack.c.b16 %v281, %v279
    %v338 = vpack.c.b16 %v282, %v280
    %v339 = vpack.c.b16 %v285, %v283
    %v340 = vpack.c.b16 %v286, %v284
    %v341 = vpack.c.b16 %v289, %v287
    %v342 = vpack.c.b16 %v290, %v288
    %v343 = vpack.c.b16 %v293, %v291
    %v344 = vpack.c.b16 %v294, %v292
    %v345 = vpack.c.b16 %v297, %v295
    %v346 = vpack.c.b16 %v298, %v296
    %v347 = vpack.c.b16 %v301, %v299
    %v348 = vpack.c.b16 %v302, %v300
    %v349 = vpack.c.b16 %v305, %v303
    %v350 = vpack.c.b16 %v306, %v304
    %v351 = vpack.c.b16 %v309, %v307
    %v352 = vpack.c.b16 %v310, %v308
    %v353 = vpack.c.b16 %v313, %v311
    %v354 = vpack.c.b16 %v314, %v312
    %v355 = vpack.c.b16 %v317, %v315
    %v356 = vpack.c.b16 %v318, %v316
    %v357 = vpack.c.b16 %v321, %v319
    %v358 = vpack.c.b16 %v322, %v320
    %v359 = vpack.c.b16 %v325, %v323
    %v360 = vpack.c.b16 %v326, %v324
    %v361 = vpack.c.b16 %v329, %v327
    %v362 = vpack.c.b16 %v330, %v328
    %vm393 = vcmask 1014784
    %v395 = vsel %vm393, %v160, 0
    %v398 = vsel %vm393, %v162, 0
    %v401 = vsel %vm393, %v164, 0
    %v404 = vsel %vm393, %v166, 0
    %v407 = vsel %vm393, %v168, 0
    %v410 = vsel %vm393, %v170, 0
    %v413 = vsel %vm393, %v172, 0
    %v416 = vsel %vm393, %v174, 0
    %v419 = vsel %vm393, %v176, 0
    %v422 = vsel %vm393, %v178, 0
    %v425 = vsel %vm393, %v180, 0
    %v428 = vsel %vm393, %v182, 0
    %v431 = vsel %vm393, %v184, 0
    %v434 = vsel %vm393, %v186, 0
    %v437 = vsel %vm393, %v188, 0
    %v440 = vsel %vm393, %v190, 0
    %v443 = vsel %vm393, %v192, 0
    %v446 = vsel %vm393, %v194, 0
    %v449 = vsel %vm393, %v196, 0
    %vm451 = vcmask 1045504
    %v453 = vsel %vm451, %v361, 0
    %v456 = vsel %vm451, %v362, 0
    %458 = vmatpush.bf16.msra.mxu0 %v345
    %459 = vmatpush.bf16.msra.mxu0 %v343
    %460 = vmatpush.bf16.msra.mxu0 %v341
    %461 = vmatpush.bf16.msra.mxu0 %v339
    %462 = vmatpush.bf16.msra.mxu0 %v337
    %463 = vmatpush.bf16.msra.mxu0 %v335
    %464 = vmatpush.bf16.msra.mxu0 %v333
    %465 = vmatpush.bf16.msra.mxu0 %v331
    %466 = vmatmul.bf16.gmra.mxu0 %v159
    %v467 = vpop.f32.mrf.mxu0
    %v468 = vadd.f32 %v231, %v467
    %v469 = vpop.f32.mrf.mxu0
    %v470 = vadd.f32 %v231, %v469
    %471 = vmatmul.bf16.gmra.mxu0 %v161
    %v472 = vpop.f32.mrf.mxu0
    %v473 = vadd.f32 %v231, %v472
    %v474 = vpop.f32.mrf.mxu0
    %v475 = vadd.f32 %v231, %v474
    %476 = vmatmul.bf16.gmra.mxu0 %v163
    %v477 = vpop.f32.mrf.mxu0
    %v478 = vadd.f32 %v231, %v477
    %v479 = vpop.f32.mrf.mxu0
    %v480 = vadd.f32 %v231, %v479
    %481 = vmatmul.bf16.gmra.mxu0 %v165
    %v482 = vpop.f32.mrf.mxu0
    %v483 = vadd.f32 %v231, %v482
    %v484 = vpop.f32.mrf.mxu0
    %v485 = vadd.f32 %v231, %v484
    %486 = vmatmul.bf16.gmra.mxu0 %v167
    %v487 = vpop.f32.mrf.mxu0
    %v488 = vadd.f32 %v231, %v487
    %v489 = vpop.f32.mrf.mxu0
    %v490 = vadd.f32 %v231, %v489
    %491 = vmatmul.bf16.gmra.mxu0 %v169
    %v492 = vpop.f32.mrf.mxu0
    %v493 = vadd.f32 %v231, %v492
    %v494 = vpop.f32.mrf.mxu0
    %v495 = vadd.f32 %v231, %v494
    %496 = vmatmul.bf16.gmra.mxu0 %v171
    %v497 = vpop.f32.mrf.mxu0
    %v498 = vadd.f32 %v231, %v497
    %v499 = vpop.f32.mrf.mxu0
    %v500 = vadd.f32 %v231, %v499
    %501 = vmatmul.bf16.gmra.mxu0 %v173
    %v502 = vpop.f32.mrf.mxu0
    %v503 = vadd.f32 %v231, %v502
    %v504 = vpop.f32.mrf.mxu0
    %v505 = vadd.f32 %v231, %v504
    %506 = vmatmul.bf16.gmra.mxu0 %v175
    %v507 = vpop.f32.mrf.mxu0
    %v508 = vadd.f32 %v231, %v507
    %v509 = vpop.f32.mrf.mxu0
    %v510 = vadd.f32 %v231, %v509
    %511 = vmatmul.bf16.gmra.mxu0 %v177
    %v512 = vpop.f32.mrf.mxu0
    %v513 = vadd.f32 %v231, %v512
    %v514 = vpop.f32.mrf.mxu0
    %v515 = vadd.f32 %v231, %v514
    %516 = vmatmul.bf16.gmra.mxu0 %v179
    %v517 = vpop.f32.mrf.mxu0
    %v518 = vadd.f32 %v231, %v517
    %v519 = vpop.f32.mrf.mxu0
    %v520 = vadd.f32 %v231, %v519
    %521 = vmatmul.bf16.gmra.mxu0 %v181
    %v522 = vpop.f32.mrf.mxu0
    %v523 = vadd.f32 %v231, %v522
    %v524 = vpop.f32.mrf.mxu0
    %v525 = vadd.f32 %v231, %v524
    %526 = vmatmul.bf16.gmra.mxu0 %v183
    %v527 = vpop.f32.mrf.mxu0
    %v528 = vadd.f32 %v231, %v527
    %v529 = vpop.f32.mrf.mxu0
    %v530 = vadd.f32 %v231, %v529
    %531 = vmatmul.bf16.gmra.mxu0 %v185
    %v532 = vpop.f32.mrf.mxu0
    %v533 = vadd.f32 %v231, %v532
    %v534 = vpop.f32.mrf.mxu0
    %v535 = vadd.f32 %v231, %v534
    %536 = vmatmul.bf16.gmra.mxu0 %v187
    %v537 = vpop.f32.mrf.mxu0
    %v538 = vadd.f32 %v231, %v537
    %v539 = vpop.f32.mrf.mxu0
    %v540 = vadd.f32 %v231, %v539
    %541 = vmatmul.bf16.gmra.mxu0 %v189
    %v542 = vpop.f32.mrf.mxu0
    %v543 = vadd.f32 %v231, %v542
    %v544 = vpop.f32.mrf.mxu0
    %v545 = vadd.f32 %v231, %v544
    %546 = vmatmul.bf16.gmra.mxu0 %v191
    %v547 = vpop.f32.mrf.mxu0
    %v548 = vadd.f32 %v231, %v547
    %v549 = vpop.f32.mrf.mxu0
    %v550 = vadd.f32 %v231, %v549
    %551 = vmatmul.bf16.gmra.mxu0 %v193
    %v552 = vpop.f32.mrf.mxu0
    %v553 = vadd.f32 %v231, %v552
    %v554 = vpop.f32.mrf.mxu0
    %v555 = vadd.f32 %v231, %v554
    %556 = vmatmul.bf16.gmra.mxu0 %v195
    %v557 = vpop.f32.mrf.mxu0
    %v558 = vadd.f32 %v231, %v557
    %v559 = vpop.f32.mrf.mxu0
    %v560 = vadd.f32 %v231, %v559
    %561 = vdwg.mxu0
    %562 = vmatpush.bf16.msra.mxu0 %v453
    %563 = vmatpush.bf16.msra.mxu0 %v359
    %564 = vmatpush.bf16.msra.mxu0 %v357
    %565 = vmatpush.bf16.msra.mxu0 %v355
    %566 = vmatpush.bf16.msra.mxu0 %v353
    %567 = vmatpush.bf16.msra.mxu0 %v351
    %568 = vmatpush.bf16.msra.mxu0 %v349
    %569 = vmatpush.bf16.msra.mxu0 %v347
    %570 = vmatmul.bf16.gmra.mxu0 %v395
    %v571 = vpop.f32.mrf.mxu0
    %v572 = vadd.f32 %v468, %v571
    %v573 = vpop.f32.mrf.mxu0
    %v574 = vadd.f32 %v470, %v573
    %575 = vmatmul.bf16.gmra.mxu0 %v398
    %v576 = vpop.f32.mrf.mxu0
    %v577 = vadd.f32 %v473, %v576
    %v578 = vpop.f32.mrf.mxu0
    %v579 = vadd.f32 %v475, %v578
    %580 = vmatmul.bf16.gmra.mxu0 %v401
    %v581 = vpop.f32.mrf.mxu0
    %v582 = vadd.f32 %v478, %v581
    %v583 = vpop.f32.mrf.mxu0
    %v584 = vadd.f32 %v480, %v583
    %585 = vmatmul.bf16.gmra.mxu0 %v404
    %v586 = vpop.f32.mrf.mxu0
    %v587 = vadd.f32 %v483, %v586
    %v588 = vpop.f32.mrf.mxu0
    %v589 = vadd.f32 %v485, %v588
    %590 = vmatmul.bf16.gmra.mxu0 %v407
    %v591 = vpop.f32.mrf.mxu0
    %v592 = vadd.f32 %v488, %v591
    %v593 = vpop.f32.mrf.mxu0
    %v594 = vadd.f32 %v490, %v593
    %595 = vmatmul.bf16.gmra.mxu0 %v410
    %v596 = vpop.f32.mrf.mxu0
    %v597 = vadd.f32 %v493, %v596
    %v598 = vpop.f32.mrf.mxu0
    %v599 = vadd.f32 %v495, %v598
    %600 = vmatmul.bf16.gmra.mxu0 %v413
    %v601 = vpop.f32.mrf.mxu0
    %v602 = vadd.f32 %v498, %v601
    %v603 = vpop.f32.mrf.mxu0
    %v604 = vadd.f32 %v500, %v603
    %605 = vmatmul.bf16.gmra.mxu0 %v416
    %v606 = vpop.f32.mrf.mxu0
    %v607 = vadd.f32 %v503, %v606
    %v608 = vpop.f32.mrf.mxu0
    %v609 = vadd.f32 %v505, %v608
    %610 = vmatmul.bf16.gmra.mxu0 %v419
    %v611 = vpop.f32.mrf.mxu0
    %v612 = vadd.f32 %v508, %v611
    %v613 = vpop.f32.mrf.mxu0
    %v614 = vadd.f32 %v510, %v613
    %615 = vmatmul.bf16.gmra.mxu0 %v422
    %v616 = vpop.f32.mrf.mxu0
    %v617 = vadd.f32 %v513, %v616
    %v618 = vpop.f32.mrf.mxu0
    %v619 = vadd.f32 %v515, %v618
    %620 = vmatmul.bf16.gmra.mxu0 %v425
    %v621 = vpop.f32.mrf.mxu0
    %v622 = vadd.f32 %v518, %v621
    %v623 = vpop.f32.mrf.mxu0
    %v624 = vadd.f32 %v520, %v623
    %625 = vmatmul.bf16.gmra.mxu0 %v428
    %v626 = vpop.f32.mrf.mxu0
    %v627 = vadd.f32 %v523, %v626
    %v628 = vpop.f32.mrf.mxu0
    %v629 = vadd.f32 %v525, %v628
    %630 = vmatmul.bf16.gmra.mxu0 %v431
    %v631 = vpop.f32.mrf.mxu0
    %v632 = vadd.f32 %v528, %v631
    %v633 = vpop.f32.mrf.mxu0
    %v634 = vadd.f32 %v530, %v633
    %635 = vmatmul.bf16.gmra.mxu0 %v434
    %v636 = vpop.f32.mrf.mxu0
    %v637 = vadd.f32 %v533, %v636
    %v638 = vpop.f32.mrf.mxu0
    %v639 = vadd.f32 %v535, %v638
    %640 = vmatmul.bf16.gmra.mxu0 %v437
    %v641 = vpop.f32.mrf.mxu0
    %v642 = vadd.f32 %v538, %v641
    %v643 = vpop.f32.mrf.mxu0
    %v644 = vadd.f32 %v540, %v643
    %645 = vmatmul.bf16.gmra.mxu0 %v440
    %v646 = vpop.f32.mrf.mxu0
    %v647 = vadd.f32 %v543, %v646
    %v648 = vpop.f32.mrf.mxu0
    %v649 = vadd.f32 %v545, %v648
    %650 = vmatmul.bf16.gmra.mxu0 %v443
    %v651 = vpop.f32.mrf.mxu0
    %v652 = vadd.f32 %v548, %v651
    %v653 = vpop.f32.mrf.mxu0
    %v654 = vadd.f32 %v550, %v653
    %655 = vmatmul.bf16.gmra.mxu0 %v446
    %v656 = vpop.f32.mrf.mxu0
    %v657 = vadd.f32 %v553, %v656
    %v658 = vpop.f32.mrf.mxu0
    %v659 = vadd.f32 %v555, %v658
    %660 = vmatmul.bf16.gmra.mxu0 %v449
    %v661 = vpop.f32.mrf.mxu0
    %v662 = vadd.f32 %v558, %v661
    %v663 = vpop.f32.mrf.mxu0
    %v664 = vadd.f32 %v560, %v663
    %665 = vdwg.mxu0
    %666 = vmatpush.bf16.msra.mxu0 %v346
    %667 = vmatpush.bf16.msra.mxu0 %v344
    %668 = vmatpush.bf16.msra.mxu0 %v342
    %669 = vmatpush.bf16.msra.mxu0 %v340
    %670 = vmatpush.bf16.msra.mxu0 %v338
    %671 = vmatpush.bf16.msra.mxu0 %v336
    %672 = vmatpush.bf16.msra.mxu0 %v334
    %673 = vmatpush.bf16.msra.mxu0 %v332
    %674 = vmatmul.bf16.gmra.mxu0 %v159
    %v675 = vpop.f32.mrf.mxu0
    %v676 = vadd.f32 %v232, %v675
    %v677 = vpop.f32.mrf.mxu0
    %v678 = vadd.f32 %v232, %v677
    %679 = vmatmul.bf16.gmra.mxu0 %v161
    %v680 = vpop.f32.mrf.mxu0
    %v681 = vadd.f32 %v232, %v680
    %v682 = vpop.f32.mrf.mxu0
    %v683 = vadd.f32 %v232, %v682
    %684 = vmatmul.bf16.gmra.mxu0 %v163
    %v685 = vpop.f32.mrf.mxu0
    %v686 = vadd.f32 %v232, %v685
    %v687 = vpop.f32.mrf.mxu0
    %v688 = vadd.f32 %v232, %v687
    %689 = vmatmul.bf16.gmra.mxu0 %v165
    %v690 = vpop.f32.mrf.mxu0
    %v691 = vadd.f32 %v232, %v690
    %v692 = vpop.f32.mrf.mxu0
    %v693 = vadd.f32 %v232, %v692
    %694 = vmatmul.bf16.gmra.mxu0 %v167
    %v695 = vpop.f32.mrf.mxu0
    %v696 = vadd.f32 %v232, %v695
    %v697 = vpop.f32.mrf.mxu0
    %v698 = vadd.f32 %v232, %v697
    %699 = vmatmul.bf16.gmra.mxu0 %v169
    %v700 = vpop.f32.mrf.mxu0
    %v701 = vadd.f32 %v232, %v700
    %v702 = vpop.f32.mrf.mxu0
    %v703 = vadd.f32 %v232, %v702
    %704 = vmatmul.bf16.gmra.mxu0 %v171
    %v705 = vpop.f32.mrf.mxu0
    %v706 = vadd.f32 %v232, %v705
    %v707 = vpop.f32.mrf.mxu0
    %v708 = vadd.f32 %v232, %v707
    %709 = vmatmul.bf16.gmra.mxu0 %v173
    %v710 = vpop.f32.mrf.mxu0
    %v711 = vadd.f32 %v232, %v710
    %v712 = vpop.f32.mrf.mxu0
    %v713 = vadd.f32 %v232, %v712
    %714 = vmatmul.bf16.gmra.mxu0 %v175
    %v715 = vpop.f32.mrf.mxu0
    %v716 = vadd.f32 %v232, %v715
    %v717 = vpop.f32.mrf.mxu0
    %v718 = vadd.f32 %v232, %v717
    %719 = vmatmul.bf16.gmra.mxu0 %v177
    %v720 = vpop.f32.mrf.mxu0
    %v721 = vadd.f32 %v232, %v720
    %v722 = vpop.f32.mrf.mxu0
    %v723 = vadd.f32 %v232, %v722
    %724 = vmatmul.bf16.gmra.mxu0 %v179
    %v725 = vpop.f32.mrf.mxu0
    %v726 = vadd.f32 %v232, %v725
    %v727 = vpop.f32.mrf.mxu0
    %v728 = vadd.f32 %v232, %v727
    %729 = vmatmul.bf16.gmra.mxu0 %v181
    %v730 = vpop.f32.mrf.mxu0
    %v731 = vadd.f32 %v232, %v730
    %v732 = vpop.f32.mrf.mxu0
    %v733 = vadd.f32 %v232, %v732
    %734 = vmatmul.bf16.gmra.mxu0 %v183
    %v735 = vpop.f32.mrf.mxu0
    %v736 = vadd.f32 %v232, %v735
    %v737 = vpop.f32.mrf.mxu0
    %v738 = vadd.f32 %v232, %v737
    %739 = vmatmul.bf16.gmra.mxu0 %v185
    %v740 = vpop.f32.mrf.mxu0
    %v741 = vadd.f32 %v232, %v740
    %v742 = vpop.f32.mrf.mxu0
    %v743 = vadd.f32 %v232, %v742
    %744 = vmatmul.bf16.gmra.mxu0 %v187
    %v745 = vpop.f32.mrf.mxu0
    %v746 = vadd.f32 %v232, %v745
    %v747 = vpop.f32.mrf.mxu0
    %v748 = vadd.f32 %v232, %v747
    %749 = vmatmul.bf16.gmra.mxu0 %v189
    %v750 = vpop.f32.mrf.mxu0
    %v751 = vadd.f32 %v232, %v750
    %v752 = vpop.f32.mrf.mxu0
    %v753 = vadd.f32 %v232, %v752
    %754 = vmatmul.bf16.gmra.mxu0 %v191
    %v755 = vpop.f32.mrf.mxu0
    %v756 = vadd.f32 %v232, %v755
    %v757 = vpop.f32.mrf.mxu0
    %v758 = vadd.f32 %v232, %v757
    %759 = vmatmul.bf16.gmra.mxu0 %v193
    %v760 = vpop.f32.mrf.mxu0
    %v761 = vadd.f32 %v232, %v760
    %v762 = vpop.f32.mrf.mxu0
    %v763 = vadd.f32 %v232, %v762
    %764 = vmatmul.bf16.gmra.mxu0 %v195
    %v765 = vpop.f32.mrf.mxu0
    %v766 = vadd.f32 %v232, %v765
    %v767 = vpop.f32.mrf.mxu0
    %v768 = vadd.f32 %v232, %v767
    %769 = vdwg.mxu0
    %770 = vmatpush.bf16.msra.mxu0 %v456
    %771 = vmatpush.bf16.msra.mxu0 %v360
    %772 = vmatpush.bf16.msra.mxu0 %v358
    %773 = vmatpush.bf16.msra.mxu0 %v356
    %774 = vmatpush.bf16.msra.mxu0 %v354
    %775 = vmatpush.bf16.msra.mxu0 %v352
    %776 = vmatpush.bf16.msra.mxu0 %v350
    %777 = vmatpush.bf16.msra.mxu0 %v348
    %778 = vmatmul.bf16.gmra.mxu0 %v395
    %v779 = vpop.f32.mrf.mxu0
    %v780 = vadd.f32 %v676, %v779
    %v781 = vpop.f32.mrf.mxu0
    %v782 = vadd.f32 %v678, %v781
    %783 = vmatmul.bf16.gmra.mxu0 %v398
    %v784 = vpop.f32.mrf.mxu0
    %v785 = vadd.f32 %v681, %v784
    %v786 = vpop.f32.mrf.mxu0
    %v787 = vadd.f32 %v683, %v786
    %788 = vmatmul.bf16.gmra.mxu0 %v401
    %v789 = vpop.f32.mrf.mxu0
    %v790 = vadd.f32 %v686, %v789
    %v791 = vpop.f32.mrf.mxu0
    %v792 = vadd.f32 %v688, %v791
    %793 = vmatmul.bf16.gmra.mxu0 %v404
    %v794 = vpop.f32.mrf.mxu0
    %v795 = vadd.f32 %v691, %v794
    %v796 = vpop.f32.mrf.mxu0
    %v797 = vadd.f32 %v693, %v796
    %798 = vmatmul.bf16.gmra.mxu0 %v407
    %v799 = vpop.f32.mrf.mxu0
    %v800 = vadd.f32 %v696, %v799
    %v801 = vpop.f32.mrf.mxu0
    %v802 = vadd.f32 %v698, %v801
    %803 = vmatmul.bf16.gmra.mxu0 %v410
    %v804 = vpop.f32.mrf.mxu0
    %v805 = vadd.f32 %v701, %v804
    %v806 = vpop.f32.mrf.mxu0
    %v807 = vadd.f32 %v703, %v806
    %808 = vmatmul.bf16.gmra.mxu0 %v413
    %v809 = vpop.f32.mrf.mxu0
    %v810 = vadd.f32 %v706, %v809
    %v811 = vpop.f32.mrf.mxu0
    %v812 = vadd.f32 %v708, %v811
    %813 = vmatmul.bf16.gmra.mxu0 %v416
    %v814 = vpop.f32.mrf.mxu0
    %v815 = vadd.f32 %v711, %v814
    %v816 = vpop.f32.mrf.mxu0
    %v817 = vadd.f32 %v713, %v816
    %818 = vmatmul.bf16.gmra.mxu0 %v419
    %v819 = vpop.f32.mrf.mxu0
    %v820 = vadd.f32 %v716, %v819
    %v821 = vpop.f32.mrf.mxu0
    %v822 = vadd.f32 %v718, %v821
    %823 = vmatmul.bf16.gmra.mxu0 %v422
    %v824 = vpop.f32.mrf.mxu0
    %v825 = vadd.f32 %v721, %v824
    %v826 = vpop.f32.mrf.mxu0
    %v827 = vadd.f32 %v723, %v826
    %828 = vmatmul.bf16.gmra.mxu0 %v425
    %v829 = vpop.f32.mrf.mxu0
    %v830 = vadd.f32 %v726, %v829
    %v831 = vpop.f32.mrf.mxu0
    %v832 = vadd.f32 %v728, %v831
    %833 = vmatmul.bf16.gmra.mxu0 %v428
    %v834 = vpop.f32.mrf.mxu0
    %v835 = vadd.f32 %v731, %v834
    %v836 = vpop.f32.mrf.mxu0
    %v837 = vadd.f32 %v733, %v836
    %838 = vmatmul.bf16.gmra.mxu0 %v431
    %v839 = vpop.f32.mrf.mxu0
    %v840 = vadd.f32 %v736, %v839
    %v841 = vpop.f32.mrf.mxu0
    %v842 = vadd.f32 %v738, %v841
    %843 = vmatmul.bf16.gmra.mxu0 %v434
    %v844 = vpop.f32.mrf.mxu0
    %v845 = vadd.f32 %v741, %v844
    %v846 = vpop.f32.mrf.mxu0
    %v847 = vadd.f32 %v743, %v846
    %848 = vmatmul.bf16.gmra.mxu0 %v437
    %v849 = vpop.f32.mrf.mxu0
    %v850 = vadd.f32 %v746, %v849
    %v851 = vpop.f32.mrf.mxu0
    %v852 = vadd.f32 %v748, %v851
    %853 = vmatmul.bf16.gmra.mxu0 %v440
    %v854 = vpop.f32.mrf.mxu0
    %v855 = vadd.f32 %v751, %v854
    %v856 = vpop.f32.mrf.mxu0
    %v857 = vadd.f32 %v753, %v856
    %858 = vmatmul.bf16.gmra.mxu0 %v443
    %v859 = vpop.f32.mrf.mxu0
    %v860 = vadd.f32 %v756, %v859
    %v861 = vpop.f32.mrf.mxu0
    %v862 = vadd.f32 %v758, %v861
    %863 = vmatmul.bf16.gmra.mxu0 %v446
    %v864 = vpop.f32.mrf.mxu0
    %v865 = vadd.f32 %v761, %v864
    %v866 = vpop.f32.mrf.mxu0
    %v867 = vadd.f32 %v763, %v866
    %868 = vmatmul.bf16.gmra.mxu0 %v449
    %v869 = vpop.f32.mrf.mxu0
    %v870 = vadd.f32 %v766, %v869
    %v871 = vpop.f32.mrf.mxu0
    %v872 = vadd.f32 %v768, %v871
    %873 = vdwg.mxu0
    %v874 = vmax.f32 %v572, 0.0
    %v875 = vmax.f32 %v780, 0.0
    %v876 = vmax.f32 %v574, 0.0
    %v877 = vmax.f32 %v782, 0.0
    %v878 = vmax.f32 %v577, 0.0
    %v879 = vmax.f32 %v785, 0.0
    %v880 = vmax.f32 %v579, 0.0
    %v881 = vmax.f32 %v787, 0.0
    %v882 = vmax.f32 %v582, 0.0
    %v883 = vmax.f32 %v790, 0.0
    %v884 = vmax.f32 %v584, 0.0
    %v885 = vmax.f32 %v792, 0.0
    %v886 = vmax.f32 %v587, 0.0
    %v887 = vmax.f32 %v795, 0.0
    %v888 = vmax.f32 %v589, 0.0
    %v889 = vmax.f32 %v797, 0.0
    %v890 = vmax.f32 %v592, 0.0
    %v891 = vmax.f32 %v800, 0.0
    %v892 = vmax.f32 %v594, 0.0
    %v893 = vmax.f32 %v802, 0.0
    %v894 = vmax.f32 %v597, 0.0
    %v895 = vmax.f32 %v805, 0.0
    %v896 = vmax.f32 %v599, 0.0
    %v897 = vmax.f32 %v807, 0.0
    %v898 = vmax.f32 %v602, 0.0
    %v899 = vmax.f32 %v810, 0.0
    %v900 = vmax.f32 %v604, 0.0
    %v901 = vmax.f32 %v812, 0.0
    %v902 = vmax.f32 %v607, 0.0
    %v903 = vmax.f32 %v815, 0.0
    %v904 = vmax.f32 %v609, 0.0
    %v905 = vmax.f32 %v817, 0.0
    %v906 = vmax.f32 %v612, 0.0
    %v907 = vmax.f32 %v820, 0.0
    %v908 = vmax.f32 %v614, 0.0
    %v909 = vmax.f32 %v822, 0.0
    %v910 = vmax.f32 %v617, 0.0
    %v911 = vmax.f32 %v825, 0.0
    %v912 = vmax.f32 %v619, 0.0
    %v913 = vmax.f32 %v827, 0.0
    %v914 = vmax.f32 %v622, 0.0
    %v915 = vmax.f32 %v830, 0.0
    %v916 = vmax.f32 %v624, 0.0
    %v917 = vmax.f32 %v832, 0.0
    %v918 = vmax.f32 %v627, 0.0
    %v919 = vmax.f32 %v835, 0.0
    %v920 = vmax.f32 %v629, 0.0
    %v921 = vmax.f32 %v837, 0.0
    %v922 = vmax.f32 %v632, 0.0
    %v923 = vmax.f32 %v840, 0.0
    %v924 = vmax.f32 %v634, 0.0
    %v925 = vmax.f32 %v842, 0.0
    %v926 = vmax.f32 %v637, 0.0
    %v927 = vmax.f32 %v845, 0.0
    %v928 = vmax.f32 %v639, 0.0
    %v929 = vmax.f32 %v847, 0.0
    %v930 = vmax.f32 %v642, 0.0
    %v931 = vmax.f32 %v850, 0.0
    %v932 = vmax.f32 %v644, 0.0
    %v933 = vmax.f32 %v852, 0.0
    %v934 = vmax.f32 %v647, 0.0
    %v935 = vmax.f32 %v855, 0.0
    %v936 = vmax.f32 %v649, 0.0
    %v937 = vmax.f32 %v857, 0.0
    %v938 = vmax.f32 %v652, 0.0
    %v939 = vmax.f32 %v860, 0.0
    %v940 = vmax.f32 %v654, 0.0
    %v941 = vmax.f32 %v862, 0.0
    %v942 = vmax.f32 %v657, 0.0
    %v943 = vmax.f32 %v865, 0.0
    %v944 = vmax.f32 %v659, 0.0
    %v945 = vmax.f32 %v867, 0.0
    %v946 = vmax.f32 %v662, 0.0
    %v947 = vmax.f32 %v870, 0.0
    %v948 = vmax.f32 %v664, 0.0
    %v949 = vmax.f32 %v872, 0.0
    %v950 = vpack.c.bf16 %v876, %v874
    %v951 = vpack.c.bf16 %v877, %v875
    %v952 = vpack.c.bf16 %v880, %v878
    %v953 = vpack.c.bf16 %v881, %v879
    %v954 = vpack.c.bf16 %v884, %v882
    %v955 = vpack.c.bf16 %v885, %v883
    %v956 = vpack.c.bf16 %v888, %v886
    %v957 = vpack.c.bf16 %v889, %v887
    %v958 = vpack.c.bf16 %v892, %v890
    %v959 = vpack.c.bf16 %v893, %v891
    %v960 = vpack.c.bf16 %v896, %v894
    %v961 = vpack.c.bf16 %v897, %v895
    %v962 = vpack.c.bf16 %v900, %v898
    %v963 = vpack.c.bf16 %v901, %v899
    %v964 = vpack.c.bf16 %v904, %v902
    %v965 = vpack.c.bf16 %v905, %v903
    %v966 = vpack.c.bf16 %v908, %v906
    %v967 = vpack.c.bf16 %v909, %v907
    %v968 = vpack.c.bf16 %v912, %v910
    %v969 = vpack.c.bf16 %v913, %v911
    %v970 = vpack.c.bf16 %v916, %v914
    %v971 = vpack.c.bf16 %v917, %v915
    %v972 = vpack.c.bf16 %v920, %v918
    %v973 = vpack.c.bf16 %v921, %v919
    %v974 = vpack.c.bf16 %v924, %v922
    %v975 = vpack.c.bf16 %v925, %v923
    %v976 = vpack.c.bf16 %v928, %v926
    %v977 = vpack.c.bf16 %v929, %v927
    %v978 = vpack.c.bf16 %v932, %v930
    %v979 = vpack.c.bf16 %v933, %v931
    %v980 = vpack.c.bf16 %v936, %v934
    %v981 = vpack.c.bf16 %v937, %v935
    %v982 = vpack.c.bf16 %v940, %v938
    %v983 = vpack.c.bf16 %v941, %v939
    %v984 = vpack.c.bf16 %v944, %v942
    %v985 = vpack.c.bf16 %v945, %v943
    %v986 = vpack.c.bf16 %v948, %v946
    %v987 = vpack.c.bf16 %v949, %v947
    %v988 = vld [vmem:[#allocation8] sm:$0xf]
    %v989 = vld [vmem:[#allocation8 + $0x4] sm:$0xf]
    %v990 = vld [vmem:[#allocation8 + $0x8] sm:$0xf]
    %v991 = vld [vmem:[#allocation8 + $0xc] sm:$0xf]
    %v992 = vld [vmem:[#allocation8 + $0x10] sm:$0xf]
    %v993 = vld [vmem:[#allocation8 + $0x14] sm:$0xf]
    %v994 = vld [vmem:[#allocation8 + $0x18] sm:$0xf]
    %v995 = vld [vmem:[#allocation8 + $0x1c] sm:$0xf]
    %v996 = vld [vmem:[#allocation8 + $0x20] sm:$0xf]
    %v997 = vld [vmem:[#allocation8 + $0x24] sm:$0xf]
    %v998 = vld [vmem:[#allocation8 + $0x28] sm:$0xf]
    %v999 = vld [vmem:[#allocation8 + $0x2c] sm:$0xf]
    %v1000 = vld [vmem:[#allocation8 + $0x30] sm:$0xf]
    %v1001 = vld [vmem:[#allocation8 + $0x34] sm:$0xf]
    %v1002 = vld [vmem:[#allocation8 + $0x38] sm:$0xf]
    %v1003 = vld [vmem:[#allocation8 + $0x3c] sm:$0xf]
    %v1004 = vld [vmem:[#allocation8 + $0x40] sm:$0xf]
    %v1005 = vld [vmem:[#allocation8 + $0x44] sm:$0xf]
    %v1006 = vld [vmem:[#allocation8 + $0x48] sm:$0xf]
    %v1007 = vld [vmem:[#allocation8 + $0x4c] sm:$0xf]
    %v1008 = vld [vmem:[#allocation8 + $0x50] sm:$0xf]
    %v1009 = vld [vmem:[#allocation8 + $0x54] sm:$0xf]
    %v1010 = vld [vmem:[#allocation8 + $0x58] sm:$0xf]
    %v1011 = vld [vmem:[#allocation8 + $0x5c] sm:$0xf]
    %v1012 = vld [vmem:[#allocation8 + $0x60] sm:$0xf]
    %v1013 = vld [vmem:[#allocation8 + $0x64] sm:$0xf]
    %v1014 = vld [vmem:[#allocation8 + $0x68] sm:$0xf]
    %v1015 = vld [vmem:[#allocation8 + $0x6c] sm:$0xf]
    %v1016 = vld [vmem:[#allocation8 + $0x70] sm:$0xf]
    %v1017 = vld [vmem:[#allocation8 + $0x74] sm:$0xf]
    %v1018 = vld [vmem:[#allocation8 + $0x78] sm:$0xf]
    %v1019 = vld [vmem:[#allocation8 + $0x7c] sm:$0xf]
    %v1020 = vld [vmem:[%s4] sm:$0x1]
    %v1022 = vperm.slane %v1020, 0
    %v1056 = vunpack.c.l.b16 %v988
    %v1057 = vunpack.c.l.b16 %v989
    %v1058 = vunpack.c.l.b16 %v990
    %v1059 = vunpack.c.l.b16 %v991
    %v1060 = vunpack.c.l.b16 %v992
    %v1061 = vunpack.c.l.b16 %v993
    %v1062 = vunpack.c.l.b16 %v994
    %v1063 = vunpack.c.l.b16 %v995
    %v1064 = vunpack.c.l.b16 %v996
    %v1065 = vunpack.c.l.b16 %v997
    %v1066 = vunpack.c.l.b16 %v998
    %v1067 = vunpack.c.l.b16 %v999
    %v1068 = vunpack.c.l.b16 %v1000
    %v1069 = vunpack.c.l.b16 %v1001
    %v1070 = vunpack.c.l.b16 %v1002
    %v1071 = vunpack.c.l.b16 %v1003
    %v1072 = vunpack.c.l.b16 %v1004
    %v1073 = vunpack.c.l.b16 %v1005
    %v1074 = vunpack.c.l.b16 %v1006
    %v1075 = vunpack.c.l.b16 %v1007
    %v1076 = vunpack.c.l.b16 %v1008
    %v1077 = vunpack.c.l.b16 %v1009
    %v1078 = vunpack.c.l.b16 %v1010
    %v1079 = vunpack.c.l.b16 %v1011
    %v1080 = vunpack.c.l.b16 %v1012
    %v1081 = vunpack.c.l.b16 %v1013
    %v1082 = vunpack.c.l.b16 %v1014
    %v1083 = vunpack.c.l.b16 %v1015
    %v1084 = vunpack.c.l.b16 %v1016
    %v1085 = vunpack.c.l.b16 %v1017
    %v1086 = vunpack.c.l.b16 %v1018
    %v1087 = vunpack.c.l.b16 %v1019
    %v1088 = vpack.c.b16 %v1057, %v1056
    %v1089 = vpack.c.b16 %v1059, %v1058
    %v1090 = vpack.c.b16 %v1061, %v1060
    %v1091 = vpack.c.b16 %v1063, %v1062
    %v1092 = vpack.c.b16 %v1065, %v1064
    %v1093 = vpack.c.b16 %v1067, %v1066
    %v1094 = vpack.c.b16 %v1069, %v1068
    %v1095 = vpack.c.b16 %v1071, %v1070
    %v1096 = vpack.c.b16 %v1073, %v1072
    %v1097 = vpack.c.b16 %v1075, %v1074
    %v1098 = vpack.c.b16 %v1077, %v1076
    %v1099 = vpack.c.b16 %v1079, %v1078
    %v1100 = vpack.c.b16 %v1081, %v1080
    %v1101 = vpack.c.b16 %v1083, %v1082
    %v1102 = vpack.c.b16 %v1085, %v1084
    %v1103 = vpack.c.b16 %v1087, %v1086
    %1120 = vmatpush.bf16.msra.mxu0 %v1095
    %1121 = vmatpush.bf16.msra.mxu0 %v1094
    %1122 = vmatpush.bf16.msra.mxu0 %v1093
    %1123 = vmatpush.bf16.msra.mxu0 %v1092
    %1124 = vmatpush.bf16.msra.mxu0 %v1091
    %1125 = vmatpush.bf16.msra.mxu0 %v1090
    %1126 = vmatpush.bf16.msra.mxu0 %v1089
    %1127 = vmatpush.bf16.msra.mxu0 %v1088
    %1128 = vmatmul.bf16.gmra.mxu0 %v950
    %v1129 = vpop.f32.mrf.mxu0
    %v1130 = vadd.f32 %v1022, %v1129
    %v1131 = vpop.f32.mrf.mxu0
    %v1132 = vadd.f32 %v1022, %v1131
    %1133 = vmatmul.bf16.gmra.mxu0 %v952
    %v1134 = vpop.f32.mrf.mxu0
    %v1135 = vadd.f32 %v1022, %v1134
    %v1136 = vpop.f32.mrf.mxu0
    %v1137 = vadd.f32 %v1022, %v1136
    %1138 = vmatmul.bf16.gmra.mxu0 %v954
    %v1139 = vpop.f32.mrf.mxu0
    %v1140 = vadd.f32 %v1022, %v1139
    %v1141 = vpop.f32.mrf.mxu0
    %v1142 = vadd.f32 %v1022, %v1141
    %1143 = vmatmul.bf16.gmra.mxu0 %v956
    %v1144 = vpop.f32.mrf.mxu0
    %v1145 = vadd.f32 %v1022, %v1144
    %v1146 = vpop.f32.mrf.mxu0
    %v1147 = vadd.f32 %v1022, %v1146
    %1148 = vmatmul.bf16.gmra.mxu0 %v958
    %v1149 = vpop.f32.mrf.mxu0
    %v1150 = vadd.f32 %v1022, %v1149
    %v1151 = vpop.f32.mrf.mxu0
    %v1152 = vadd.f32 %v1022, %v1151
    %1153 = vmatmul.bf16.gmra.mxu0 %v960
    %v1154 = vpop.f32.mrf.mxu0
    %v1155 = vadd.f32 %v1022, %v1154
    %v1156 = vpop.f32.mrf.mxu0
    %v1157 = vadd.f32 %v1022, %v1156
    %1158 = vmatmul.bf16.gmra.mxu0 %v962
    %v1159 = vpop.f32.mrf.mxu0
    %v1160 = vadd.f32 %v1022, %v1159
    %v1161 = vpop.f32.mrf.mxu0
    %v1162 = vadd.f32 %v1022, %v1161
    %1163 = vmatmul.bf16.gmra.mxu0 %v964
    %v1164 = vpop.f32.mrf.mxu0
    %v1165 = vadd.f32 %v1022, %v1164
    %v1166 = vpop.f32.mrf.mxu0
    %v1167 = vadd.f32 %v1022, %v1166
    %1168 = vmatmul.bf16.gmra.mxu0 %v966
    %v1169 = vpop.f32.mrf.mxu0
    %v1170 = vadd.f32 %v1022, %v1169
    %v1171 = vpop.f32.mrf.mxu0
    %v1172 = vadd.f32 %v1022, %v1171
    %1173 = vmatmul.bf16.gmra.mxu0 %v968
    %v1174 = vpop.f32.mrf.mxu0
    %v1175 = vadd.f32 %v1022, %v1174
    %v1176 = vpop.f32.mrf.mxu0
    %v1177 = vadd.f32 %v1022, %v1176
    %1178 = vmatmul.bf16.gmra.mxu0 %v970
    %v1179 = vpop.f32.mrf.mxu0
    %v1180 = vadd.f32 %v1022, %v1179
    %v1181 = vpop.f32.mrf.mxu0
    %v1182 = vadd.f32 %v1022, %v1181
    %1183 = vmatmul.bf16.gmra.mxu0 %v972
    %v1184 = vpop.f32.mrf.mxu0
    %v1185 = vadd.f32 %v1022, %v1184
    %v1186 = vpop.f32.mrf.mxu0
    %v1187 = vadd.f32 %v1022, %v1186
    %1188 = vmatmul.bf16.gmra.mxu0 %v974
    %v1189 = vpop.f32.mrf.mxu0
    %v1190 = vadd.f32 %v1022, %v1189
    %v1191 = vpop.f32.mrf.mxu0
    %v1192 = vadd.f32 %v1022, %v1191
    %1193 = vmatmul.bf16.gmra.mxu0 %v976
    %v1194 = vpop.f32.mrf.mxu0
    %v1195 = vadd.f32 %v1022, %v1194
    %v1196 = vpop.f32.mrf.mxu0
    %v1197 = vadd.f32 %v1022, %v1196
    %1198 = vmatmul.bf16.gmra.mxu0 %v978
    %v1199 = vpop.f32.mrf.mxu0
    %v1200 = vadd.f32 %v1022, %v1199
    %v1201 = vpop.f32.mrf.mxu0
    %v1202 = vadd.f32 %v1022, %v1201
    %1203 = vmatmul.bf16.gmra.mxu0 %v980
    %v1204 = vpop.f32.mrf.mxu0
    %v1205 = vadd.f32 %v1022, %v1204
    %v1206 = vpop.f32.mrf.mxu0
    %v1207 = vadd.f32 %v1022, %v1206
    %1208 = vmatmul.bf16.gmra.mxu0 %v982
    %v1209 = vpop.f32.mrf.mxu0
    %v1210 = vadd.f32 %v1022, %v1209
    %v1211 = vpop.f32.mrf.mxu0
    %v1212 = vadd.f32 %v1022, %v1211
    %1213 = vmatmul.bf16.gmra.mxu0 %v984
    %v1214 = vpop.f32.mrf.mxu0
    %v1215 = vadd.f32 %v1022, %v1214
    %v1216 = vpop.f32.mrf.mxu0
    %v1217 = vadd.f32 %v1022, %v1216
    %1218 = vmatmul.bf16.gmra.mxu0 %v986
    %v1219 = vpop.f32.mrf.mxu0
    %v1220 = vadd.f32 %v1022, %v1219
    %v1221 = vpop.f32.mrf.mxu0
    %v1222 = vadd.f32 %v1022, %v1221
    %1223 = vdwg.mxu0
    %1224 = vmatpush.bf16.msra.mxu0 %v1103
    %1225 = vmatpush.bf16.msra.mxu0 %v1102
    %1226 = vmatpush.bf16.msra.mxu0 %v1101
    %1227 = vmatpush.bf16.msra.mxu0 %v1100
    %1228 = vmatpush.bf16.msra.mxu0 %v1099
    %1229 = vmatpush.bf16.msra.mxu0 %v1098
    %1230 = vmatpush.bf16.msra.mxu0 %v1097
    %1231 = vmatpush.bf16.msra.mxu0 %v1096
    %1232 = vmatmul.bf16.gmra.mxu0 %v951
    %v1233 = vpop.f32.mrf.mxu0
    %v1234 = vadd.f32 %v1130, %v1233
    %v1235 = vpop.f32.mrf.mxu0
    %v1236 = vadd.f32 %v1132, %v1235
    %1237 = vmatmul.bf16.gmra.mxu0 %v953
    %v1238 = vpop.f32.mrf.mxu0
    %v1239 = vadd.f32 %v1135, %v1238
    %v1240 = vpop.f32.mrf.mxu0
    %v1241 = vadd.f32 %v1137, %v1240
    %1242 = vmatmul.bf16.gmra.mxu0 %v955
    %v1243 = vpop.f32.mrf.mxu0
    %v1244 = vadd.f32 %v1140, %v1243
    %v1245 = vpop.f32.mrf.mxu0
    %v1246 = vadd.f32 %v1142, %v1245
    %1247 = vmatmul.bf16.gmra.mxu0 %v957
    %v1248 = vpop.f32.mrf.mxu0
    %v1249 = vadd.f32 %v1145, %v1248
    %v1250 = vpop.f32.mrf.mxu0
    %v1251 = vadd.f32 %v1147, %v1250
    %1252 = vmatmul.bf16.gmra.mxu0 %v959
    %v1253 = vpop.f32.mrf.mxu0
    %v1254 = vadd.f32 %v1150, %v1253
    %v1255 = vpop.f32.mrf.mxu0
    %v1256 = vadd.f32 %v1152, %v1255
    %1257 = vmatmul.bf16.gmra.mxu0 %v961
    %v1258 = vpop.f32.mrf.mxu0
    %v1259 = vadd.f32 %v1155, %v1258
    %v1260 = vpop.f32.mrf.mxu0
    %v1261 = vadd.f32 %v1157, %v1260
    %1262 = vmatmul.bf16.gmra.mxu0 %v963
    %v1263 = vpop.f32.mrf.mxu0
    %v1264 = vadd.f32 %v1160, %v1263
    %v1265 = vpop.f32.mrf.mxu0
    %v1266 = vadd.f32 %v1162, %v1265
    %1267 = vmatmul.bf16.gmra.mxu0 %v965
    %v1268 = vpop.f32.mrf.mxu0
    %v1269 = vadd.f32 %v1165, %v1268
    %v1270 = vpop.f32.mrf.mxu0
    %v1271 = vadd.f32 %v1167, %v1270
    %1272 = vmatmul.bf16.gmra.mxu0 %v967
    %v1273 = vpop.f32.mrf.mxu0
    %v1274 = vadd.f32 %v1170, %v1273
    %v1275 = vpop.f32.mrf.mxu0
    %v1276 = vadd.f32 %v1172, %v1275
    %1277 = vmatmul.bf16.gmra.mxu0 %v969
    %v1278 = vpop.f32.mrf.mxu0
    %v1279 = vadd.f32 %v1175, %v1278
    %v1280 = vpop.f32.mrf.mxu0
    %v1281 = vadd.f32 %v1177, %v1280
    %1282 = vmatmul.bf16.gmra.mxu0 %v971
    %v1283 = vpop.f32.mrf.mxu0
    %v1284 = vadd.f32 %v1180, %v1283
    %v1285 = vpop.f32.mrf.mxu0
    %v1286 = vadd.f32 %v1182, %v1285
    %1287 = vmatmul.bf16.gmra.mxu0 %v973
    %v1288 = vpop.f32.mrf.mxu0
    %v1289 = vadd.f32 %v1185, %v1288
    %v1290 = vpop.f32.mrf.mxu0
    %v1291 = vadd.f32 %v1187, %v1290
    %1292 = vmatmul.bf16.gmra.mxu0 %v975
    %v1293 = vpop.f32.mrf.mxu0
    %v1294 = vadd.f32 %v1190, %v1293
    %v1295 = vpop.f32.mrf.mxu0
    %v1296 = vadd.f32 %v1192, %v1295
    %1297 = vmatmul.bf16.gmra.mxu0 %v977
    %v1298 = vpop.f32.mrf.mxu0
    %v1299 = vadd.f32 %v1195, %v1298
    %v1300 = vpop.f32.mrf.mxu0
    %v1301 = vadd.f32 %v1197, %v1300
    %1302 = vmatmul.bf16.gmra.mxu0 %v979
    %v1303 = vpop.f32.mrf.mxu0
    %v1304 = vadd.f32 %v1200, %v1303
    %v1305 = vpop.f32.mrf.mxu0
    %v1306 = vadd.f32 %v1202, %v1305
    %1307 = vmatmul.bf16.gmra.mxu0 %v981
    %v1308 = vpop.f32.mrf.mxu0
    %v1309 = vadd.f32 %v1205, %v1308
    %v1310 = vpop.f32.mrf.mxu0
    %v1311 = vadd.f32 %v1207, %v1310
    %1312 = vmatmul.bf16.gmra.mxu0 %v983
    %v1313 = vpop.f32.mrf.mxu0
    %v1314 = vadd.f32 %v1210, %v1313
    %v1315 = vpop.f32.mrf.mxu0
    %v1316 = vadd.f32 %v1212, %v1315
    %1317 = vmatmul.bf16.gmra.mxu0 %v985
    %v1318 = vpop.f32.mrf.mxu0
    %v1319 = vadd.f32 %v1215, %v1318
    %v1320 = vpop.f32.mrf.mxu0
    %v1321 = vadd.f32 %v1217, %v1320
    %1322 = vmatmul.bf16.gmra.mxu0 %v987
    %v1323 = vpop.f32.mrf.mxu0
    %v1324 = vadd.f32 %v1220, %v1323
    %v1325 = vpop.f32.mrf.mxu0
    %v1326 = vadd.f32 %v1222, %v1325
    %1327 = vdwg.mxu0
    %v1328 = vmax.f32 %v1234, 0.0
    %v1329 = vmax.f32 %v1236, 0.0
    %v1330 = vmax.f32 %v1239, 0.0
    %v1331 = vmax.f32 %v1241, 0.0
    %v1332 = vmax.f32 %v1244, 0.0
    %v1333 = vmax.f32 %v1246, 0.0
    %v1334 = vmax.f32 %v1249, 0.0
    %v1335 = vmax.f32 %v1251, 0.0
    %v1336 = vmax.f32 %v1254, 0.0
    %v1337 = vmax.f32 %v1256, 0.0
    %v1338 = vmax.f32 %v1259, 0.0
    %v1339 = vmax.f32 %v1261, 0.0
    %v1340 = vmax.f32 %v1264, 0.0
    %v1341 = vmax.f32 %v1266, 0.0
    %v1342 = vmax.f32 %v1269, 0.0
    %v1343 = vmax.f32 %v1271, 0.0
    %v1344 = vmax.f32 %v1274, 0.0
    %v1345 = vmax.f32 %v1276, 0.0
    %v1346 = vmax.f32 %v1279, 0.0
    %v1347 = vmax.f32 %v1281, 0.0
    %v1348 = vmax.f32 %v1284, 0.0
    %v1349 = vmax.f32 %v1286, 0.0
    %v1350 = vmax.f32 %v1289, 0.0
    %v1351 = vmax.f32 %v1291, 0.0
    %v1352 = vmax.f32 %v1294, 0.0
    %v1353 = vmax.f32 %v1296, 0.0
    %v1354 = vmax.f32 %v1299, 0.0
    %v1355 = vmax.f32 %v1301, 0.0
    %v1356 = vmax.f32 %v1304, 0.0
    %v1357 = vmax.f32 %v1306, 0.0
    %v1358 = vmax.f32 %v1309, 0.0
    %v1359 = vmax.f32 %v1311, 0.0
    %v1360 = vmax.f32 %v1314, 0.0
    %v1361 = vmax.f32 %v1316, 0.0
    %v1362 = vmax.f32 %v1319, 0.0
    %v1363 = vmax.f32 %v1321, 0.0
    %v1364 = vmax.f32 %v1324, 0.0
    %v1365 = vmax.f32 %v1326, 0.0
    %v1366 = vpack.c.bf16 %v1329, %v1328
    %v1367 = vpack.c.bf16 %v1331, %v1330
    %v1368 = vpack.c.bf16 %v1333, %v1332
    %v1369 = vpack.c.bf16 %v1335, %v1334
    %v1370 = vpack.c.bf16 %v1337, %v1336
    %v1371 = vpack.c.bf16 %v1339, %v1338
    %v1372 = vpack.c.bf16 %v1341, %v1340
    %v1373 = vpack.c.bf16 %v1343, %v1342
    %v1374 = vpack.c.bf16 %v1345, %v1344
    %v1375 = vpack.c.bf16 %v1347, %v1346
    %v1376 = vpack.c.bf16 %v1349, %v1348
    %v1377 = vpack.c.bf16 %v1351, %v1350
    %v1378 = vpack.c.bf16 %v1353, %v1352
    %v1379 = vpack.c.bf16 %v1355, %v1354
    %v1380 = vpack.c.bf16 %v1357, %v1356
    %v1381 = vpack.c.bf16 %v1359, %v1358
    %v1382 = vpack.c.bf16 %v1361, %v1360
    %v1383 = vpack.c.bf16 %v1363, %v1362
    %v1384 = vpack.c.bf16 %v1365, %v1364
    %v1385 = vld [vmem:[%s5] sm:$0xf]
    %v1386 = vld [vmem:[%s5 + $0x4] sm:$0xf]
    %v1387 = vld [vmem:[%s5 + $0x8] sm:$0xf]
    %v1388 = vld [vmem:[%s5 + $0xc] sm:$0xf]
    %v1389 = vld [vmem:[%s5 + $0x10] sm:$0xf]
    %v1390 = vld [vmem:[%s5 + $0x14] sm:$0xf]
    %v1391 = vld [vmem:[%s5 + $0x18] sm:$0xf]
    %v1392 = vld [vmem:[%s5 + $0x1c] sm:$0xf]
    %v1393 = vld [vmem:[%s5 + $0x20] sm:$0xf]
    %v1394 = vld [vmem:[%s5 + $0x24] sm:$0xf]
    %v1395 = vld [vmem:[%s5 + $0x28] sm:$0xf]
    %v1396 = vld [vmem:[%s5 + $0x2c] sm:$0xf]
    %v1397 = vld [vmem:[%s5 + $0x30] sm:$0xf]
    %v1398 = vld [vmem:[%s5 + $0x34] sm:$0xf]
    %v1399 = vld [vmem:[%s5 + $0x38] sm:$0xf]
    %v1400 = vld [vmem:[%s5 + $0x3c] sm:$0xf]
    %v1401 = vld [vmem:[%s6] sm:$0x1]
    %v1403 = vperm.slane %v1401, 0
    %v1421 = vunpack.c.l.b16 %v1385
    %v1422 = vunpack.c.l.b16 %v1386
    %v1423 = vunpack.c.l.b16 %v1387
    %v1424 = vunpack.c.l.b16 %v1388
    %v1425 = vunpack.c.l.b16 %v1389
    %v1426 = vunpack.c.l.b16 %v1390
    %v1427 = vunpack.c.l.b16 %v1391
    %v1428 = vunpack.c.l.b16 %v1392
    %v1429 = vunpack.c.l.b16 %v1393
    %v1430 = vunpack.c.l.b16 %v1394
    %v1431 = vunpack.c.l.b16 %v1395
    %v1432 = vunpack.c.l.b16 %v1396
    %v1433 = vunpack.c.l.b16 %v1397
    %v1434 = vunpack.c.l.b16 %v1398
    %v1435 = vunpack.c.l.b16 %v1399
    %v1436 = vunpack.c.l.b16 %v1400
    %v1437 = vpack.c.b16 %v1422, %v1421
    %v1438 = vpack.c.b16 %v1424, %v1423
    %v1439 = vpack.c.b16 %v1426, %v1425
    %v1440 = vpack.c.b16 %v1428, %v1427
    %v1441 = vpack.c.b16 %v1430, %v1429
    %v1442 = vpack.c.b16 %v1432, %v1431
    %v1443 = vpack.c.b16 %v1434, %v1433
    %v1444 = vpack.c.b16 %v1436, %v1435
    %1453 = vmatpush.bf16.msra.mxu0 %v1444
    %1454 = vmatpush.bf16.msra.mxu0 %v1443
    %1455 = vmatpush.bf16.msra.mxu0 %v1442
    %1456 = vmatpush.bf16.msra.mxu0 %v1441
    %1457 = vmatpush.bf16.msra.mxu0 %v1440
    %1458 = vmatpush.bf16.msra.mxu0 %v1439
    %1459 = vmatpush.bf16.msra.mxu0 %v1438
    %1460 = vmatpush.bf16.msra.mxu0 %v1437
    %1461 = vmatmul.bf16.gmra.mxu0 %v1366
    %v1462 = vpop.f32.mrf.mxu0
    %v1463 = vadd.f32 %v1403, %v1462
    %v1464 = vpop.f32.mrf.mxu0
    %v1465 = vadd.f32 %v1403, %v1464
    %1466 = vmatmul.bf16.gmra.mxu0 %v1367
    %v1467 = vpop.f32.mrf.mxu0
    %v1468 = vadd.f32 %v1403, %v1467
    %v1469 = vpop.f32.mrf.mxu0
    %v1470 = vadd.f32 %v1403, %v1469
    %1471 = vmatmul.bf16.gmra.mxu0 %v1368
    %v1472 = vpop.f32.mrf.mxu0
    %v1473 = vadd.f32 %v1403, %v1472
    %v1474 = vpop.f32.mrf.mxu0
    %v1475 = vadd.f32 %v1403, %v1474
    %1476 = vmatmul.bf16.gmra.mxu0 %v1369
    %v1477 = vpop.f32.mrf.mxu0
    %v1478 = vadd.f32 %v1403, %v1477
    %v1479 = vpop.f32.mrf.mxu0
    %v1480 = vadd.f32 %v1403, %v1479
    %1481 = vmatmul.bf16.gmra.mxu0 %v1370
    %v1482 = vpop.f32.mrf.mxu0
    %v1483 = vadd.f32 %v1403, %v1482
    %v1484 = vpop.f32.mrf.mxu0
    %v1485 = vadd.f32 %v1403, %v1484
    %1486 = vmatmul.bf16.gmra.mxu0 %v1371
    %v1487 = vpop.f32.mrf.mxu0
    %v1488 = vadd.f32 %v1403, %v1487
    %v1489 = vpop.f32.mrf.mxu0
    %v1490 = vadd.f32 %v1403, %v1489
    %1491 = vmatmul.bf16.gmra.mxu0 %v1372
    %v1492 = vpop.f32.mrf.mxu0
    %v1493 = vadd.f32 %v1403, %v1492
    %v1494 = vpop.f32.mrf.mxu0
    %v1495 = vadd.f32 %v1403, %v1494
    %1496 = vmatmul.bf16.gmra.mxu0 %v1373
    %v1497 = vpop.f32.mrf.mxu0
    %v1498 = vadd.f32 %v1403, %v1497
    %v1499 = vpop.f32.mrf.mxu0
    %v1500 = vadd.f32 %v1403, %v1499
    %1501 = vmatmul.bf16.gmra.mxu0 %v1374
    %v1502 = vpop.f32.mrf.mxu0
    %v1503 = vadd.f32 %v1403, %v1502
    %v1504 = vpop.f32.mrf.mxu0
    %v1505 = vadd.f32 %v1403, %v1504
    %1506 = vmatmul.bf16.gmra.mxu0 %v1375
    %v1507 = vpop.f32.mrf.mxu0
    %v1508 = vadd.f32 %v1403, %v1507
    %v1509 = vpop.f32.mrf.mxu0
    %v1510 = vadd.f32 %v1403, %v1509
    %1511 = vmatmul.bf16.gmra.mxu0 %v1376
    %v1512 = vpop.f32.mrf.mxu0
    %v1513 = vadd.f32 %v1403, %v1512
    %v1514 = vpop.f32.mrf.mxu0
    %v1515 = vadd.f32 %v1403, %v1514
    %1516 = vmatmul.bf16.gmra.mxu0 %v1377
    %v1517 = vpop.f32.mrf.mxu0
    %v1518 = vadd.f32 %v1403, %v1517
    %v1519 = vpop.f32.mrf.mxu0
    %v1520 = vadd.f32 %v1403, %v1519
    %1521 = vmatmul.bf16.gmra.mxu0 %v1378
    %v1522 = vpop.f32.mrf.mxu0
    %v1523 = vadd.f32 %v1403, %v1522
    %v1524 = vpop.f32.mrf.mxu0
    %v1525 = vadd.f32 %v1403, %v1524
    %1526 = vmatmul.bf16.gmra.mxu0 %v1379
    %v1527 = vpop.f32.mrf.mxu0
    %v1528 = vadd.f32 %v1403, %v1527
    %v1529 = vpop.f32.mrf.mxu0
    %v1530 = vadd.f32 %v1403, %v1529
    %1531 = vmatmul.bf16.gmra.mxu0 %v1380
    %v1532 = vpop.f32.mrf.mxu0
    %v1533 = vadd.f32 %v1403, %v1532
    %v1534 = vpop.f32.mrf.mxu0
    %v1535 = vadd.f32 %v1403, %v1534
    %1536 = vmatmul.bf16.gmra.mxu0 %v1381
    %v1537 = vpop.f32.mrf.mxu0
    %v1538 = vadd.f32 %v1403, %v1537
    %v1539 = vpop.f32.mrf.mxu0
    %v1540 = vadd.f32 %v1403, %v1539
    %1541 = vmatmul.bf16.gmra.mxu0 %v1382
    %v1542 = vpop.f32.mrf.mxu0
    %v1543 = vadd.f32 %v1403, %v1542
    %v1544 = vpop.f32.mrf.mxu0
    %v1545 = vadd.f32 %v1403, %v1544
    %1546 = vmatmul.bf16.gmra.mxu0 %v1383
    %v1547 = vpop.f32.mrf.mxu0
    %v1548 = vadd.f32 %v1403, %v1547
    %v1549 = vpop.f32.mrf.mxu0
    %v1550 = vadd.f32 %v1403, %v1549
    %1551 = vmatmul.bf16.gmra.mxu0 %v1384
    %v1552 = vpop.f32.mrf.mxu0
    %v1553 = vadd.f32 %v1403, %v1552
    %v1554 = vpop.f32.mrf.mxu0
    %v1555 = vadd.f32 %v1403, %v1554
    %1556 = vdwg.mxu0
    %v1557 = vmax.f32 %v1463, 0.0
    %v1558 = vmax.f32 %v1465, 0.0
    %v1559 = vmax.f32 %v1468, 0.0
    %v1560 = vmax.f32 %v1470, 0.0
    %v1561 = vmax.f32 %v1473, 0.0
    %v1562 = vmax.f32 %v1475, 0.0
    %v1563 = vmax.f32 %v1478, 0.0
    %v1564 = vmax.f32 %v1480, 0.0
    %v1565 = vmax.f32 %v1483, 0.0
    %v1566 = vmax.f32 %v1485, 0.0
    %v1567 = vmax.f32 %v1488, 0.0
    %v1568 = vmax.f32 %v1490, 0.0
    %v1569 = vmax.f32 %v1493, 0.0
    %v1570 = vmax.f32 %v1495, 0.0
    %v1571 = vmax.f32 %v1498, 0.0
    %v1572 = vmax.f32 %v1500, 0.0
    %v1573 = vmax.f32 %v1503, 0.0
    %v1574 = vmax.f32 %v1505, 0.0
    %v1575 = vmax.f32 %v1508, 0.0
    %v1576 = vmax.f32 %v1510, 0.0
    %v1577 = vmax.f32 %v1513, 0.0
    %v1578 = vmax.f32 %v1515, 0.0
    %v1579 = vmax.f32 %v1518, 0.0
    %v1580 = vmax.f32 %v1520, 0.0
    %v1581 = vmax.f32 %v1523, 0.0
    %v1582 = vmax.f32 %v1525, 0.0
    %v1583 = vmax.f32 %v1528, 0.0
    %v1584 = vmax.f32 %v1530, 0.0
    %v1585 = vmax.f32 %v1533, 0.0
    %v1586 = vmax.f32 %v1535, 0.0
    %v1587 = vmax.f32 %v1538, 0.0
    %v1588 = vmax.f32 %v1540, 0.0
    %v1589 = vmax.f32 %v1543, 0.0
    %v1590 = vmax.f32 %v1545, 0.0
    %v1591 = vmax.f32 %v1548, 0.0
    %v1592 = vmax.f32 %v1550, 0.0
    %v1593 = vmax.f32 %v1553, 0.0
    %v1594 = vmax.f32 %v1555, 0.0
    %v1595 = vld [vmem:[%s7] sm:$0x1]
    %v1596 = vpack.c.bf16 %v1558, %v1557
    %v1597 = vpack.c.bf16 %v1560, %v1559
    %v1598 = vpack.c.bf16 %v1562, %v1561
    %v1599 = vpack.c.bf16 %v1564, %v1563
    %v1600 = vpack.c.bf16 %v1566, %v1565
    %v1601 = vpack.c.bf16 %v1568, %v1567
    %v1602 = vpack.c.bf16 %v1570, %v1569
    %v1603 = vpack.c.bf16 %v1572, %v1571
    %v1604 = vpack.c.bf16 %v1574, %v1573
    %v1605 = vpack.c.bf16 %v1576, %v1575
    %v1606 = vpack.c.bf16 %v1578, %v1577
    %v1607 = vpack.c.bf16 %v1580, %v1579
    %v1608 = vpack.c.bf16 %v1582, %v1581
    %v1609 = vpack.c.bf16 %v1584, %v1583
    %v1610 = vpack.c.bf16 %v1586, %v1585
    %v1611 = vpack.c.bf16 %v1588, %v1587
    %v1612 = vpack.c.bf16 %v1590, %v1589
    %v1613 = vpack.c.bf16 %v1592, %v1591
    %v1614 = vpack.c.bf16 %v1594, %v1593
    %v1615 = vld [vmem:[#allocation2] sm:$0x1]
    %1617 = vset.pattern.permute.xlu0 0
    %1618 = vperm.xlu0 %1617, %v1615
    %v1619 = vpop.permute.xlu0 %1618
    %v1621 = vperm.slane %v1619, 0
    %vm1622 = vcmask 523264
    %v1624 = vsel %vm1622, %v1595, 0
    %v1627 = vsel %vm1622, %v1596, 0
    %v1630 = vsel %vm1622, %v1597, 0
    %v1633 = vsel %vm1622, %v1598, 0
    %v1636 = vsel %vm1622, %v1599, 0
    %v1639 = vsel %vm1622, %v1600, 0
    %v1642 = vsel %vm1622, %v1601, 0
    %v1645 = vsel %vm1622, %v1602, 0
    %v1648 = vsel %vm1622, %v1603, 0
    %v1651 = vsel %vm1622, %v1604, 0
    %v1654 = vsel %vm1622, %v1605, 0
    %v1657 = vsel %vm1622, %v1606, 0
    %v1660 = vsel %vm1622, %v1607, 0
    %v1663 = vsel %vm1622, %v1608, 0
    %v1666 = vsel %vm1622, %v1609, 0
    %v1669 = vsel %vm1622, %v1610, 0
    %v1672 = vsel %vm1622, %v1611, 0
    %v1675 = vsel %vm1622, %v1612, 0
    %v1678 = vsel %vm1622, %v1613, 0
    %v1681 = vsel %vm1622, %v1614, 0
    %1683 = vmatpush.bf16.xpose.msra.mxu0 %v1648
    %1684 = vmatpush.bf16.xpose.msra.mxu0 %v1645
    %1685 = vmatpush.bf16.xpose.msra.mxu0 %v1642
    %1686 = vmatpush.bf16.xpose.msra.mxu0 %v1639
    %1687 = vmatpush.bf16.xpose.msra.mxu0 %v1636
    %1688 = vmatpush.bf16.xpose.msra.mxu0 %v1633
    %1689 = vmatpush.bf16.xpose.msra.mxu0 %v1630
    %1690 = vmatpush.bf16.xpose.msra.mxu0 %v1627
    %1691 = vmatmul.bf16.gmra.mxu0 %v1624
    %v1692 = vpop.f32.mrf.mxu0
    %v1693 = vadd.f32 %v1621, %v1692
    %v1694 = vpop.f32.mrf.mxu0
    %1695 = vdwg.mxu0
    %1696 = vmatpush.bf16.xpose.msra.mxu0 %v1672
    %1697 = vmatpush.bf16.xpose.msra.mxu0 %v1669
    %1698 = vmatpush.bf16.xpose.msra.mxu0 %v1666
    %1699 = vmatpush.bf16.xpose.msra.mxu0 %v1663
    %1700 = vmatpush.bf16.xpose.msra.mxu0 %v1660
    %1701 = vmatpush.bf16.xpose.msra.mxu0 %v1657
    %1702 = vmatpush.bf16.xpose.msra.mxu0 %v1654
    %1703 = vmatpush.bf16.xpose.msra.mxu0 %v1651
    %1704 = vmatmul.bf16.gmra.mxu0 %v1624
    %v1705 = vpop.f32.mrf.mxu0
    %v1706 = vadd.f32 %v1621, %v1705
    %v1707 = vpop.f32.mrf.mxu0
    %1708 = vdwg.mxu0
    %1709 = vmatpush.bf16.xpose.msra.mxu0 0
    %1710 = vmatpush.bf16.xpose.msra.mxu0 0
    %1711 = vmatpush.bf16.xpose.msra.mxu0 0
    %1712 = vmatpush.bf16.xpose.msra.mxu0 0
    %1713 = vmatpush.bf16.xpose.msra.mxu0 0
    %1714 = vmatpush.bf16.xpose.msra.mxu0 %v1681
    %1715 = vmatpush.bf16.xpose.msra.mxu0 %v1678
    %1716 = vmatpush.bf16.xpose.msra.mxu0 %v1675
    %1717 = vmatmul.bf16.gmra.mxu0 %v1624
    %v1718 = vpop.f32.mrf.mxu0
    %v1719 = vadd.f32 %v1621, %v1718
    %v1720 = vpop.f32.mrf.mxu0
    %1721 = vdwg.mxu0
    %v1725 = vrot.slane %v1706, 7
    %v1726 = vrot.slane %v1719, 6
    %vm1727 = vcmask 1040384
    %v1728 = vsel %vm1727, %v1693, %v1725
    %vm1729 = vcmask 1041408
    %v1730 = vsel %vm1729, %v1728, %v1726
    %v1732 = vlaneseq
    %vm1733 = vcmp.ge.s32.totalorder %v1732, 0
    %vm1734 = vcmp.lt.s32.totalorder %v1732, 304
    %vm1735 = vmand %vm1733, %vm1734
    %1736 = vst.msk [vmem:[#allocation9] sm:$0x7] %vm1735, %v1730
    // Predicated region
    $region50: #{tpu_custom_call.1} parent=1 // pred_check
      _
    $region51: #{tpu_custom_call.1} parent=1 // pred_check_branch
      %1738 = sbr.rel (0) target = $region53
    $region52: #{tpu_custom_call.1} parent=1 // pred_region
      %1740 = vsyncadd [#allocation5], 0
      %s1742 = sshll.u32 [#allocation9], 4
      %s1743 = int_to_ptr.vmem [resolvable:$true] %s1742
      %s1744 = sshll.u32 %s9, 4
      %s1745 = int_to_ptr.hbm [resolvable:$true] %s1744
      %1747 = dma.vmem_to_hbm [thread:$0]  %s1743, 48, %s1745, [#allocation5]
    $region53: #{tpu_custom_call.1} parent=1 // pred_fallthru
      _
    // Predicated region
    $region54: #{tpu_custom_call.1} parent=1 // pred_check
      _
    $region55: #{tpu_custom_call.1} parent=1 // pred_check_branch
      %1749 = sbr.rel (0) target = $region57
    $region56: #{tpu_custom_call.1} parent=1 // pred_region
      %1751 = dma.done [#allocation5], 48
    $region57: #{tpu_custom_call.1} parent=1 // pred_fallthru
      _
    %1752 = vsyncpa [#allocation4], 1
    %1753 = vsyncpa [#allocation7], 1
    %1754 = vsyncpa [#allocation5], 1

</llo_original>
